<compile_context>
chip_gen: v6e
topology: v6e:2x2x1
jax: 0.10.0
libtpu: 0.0.40
codegen_flags: <defaults>
</compile_context>

<pallas_src>
import functools

import jax
import jax.numpy as jnp
from jax.experimental import pallas as pl
from jax.experimental.pallas import tpu as pltpu

NUM_LAYERS = 4
HIDDEN = 32          # hidden_channels (small per instructions)
BN_EPS = 1e-5
LANE = 128
NODE_ALIGN = 512     # node padding granularity -> tiles never fall below 512 wide


def _make_kernel(tn, resident):
    """Kernel factory. `tn` = node-column tile width; `resident` = A_hat fully in VMEM."""

    def gnn_kernel(h0_ref, a_ref, wt_ref, bt_ref, pt_ref,
                   w1t_ref, b1t_ref, w2t_ref,
                   out_ref, hbuf_ref, pool_ref):
        l = pl.program_id(0)                       # layer index
        t = pl.program_id(1)                       # node-column tile index
        n_t = pl.num_programs(1)
        last_layer = l == pl.num_programs(0) - 1

        write_slot = l % 2                         # layer l writes slot l%2 ...
        read_slot = 1 - write_slot                 # ... and reads slot (l+1)%2

        # First grid step: stage h0 (X @ W0' already folded in the glue) into layer 0's
        # read slot and clear the pooling accumulator.
        @pl.when((l == 0) & (t == 0))
        def _():
            hbuf_ref[1] = h0_ref[...]
            pool_ref[...] = jnp.zeros_like(pool_ref)

        start = pl.multiple_of(t * tn, tn)
        if resident:
            a_tile = a_ref[:, pl.ds(start, tn)]    # (N_pad, TN) bf16 slice of resident A_hat
        else:
            a_tile = a_ref[...]                    # (N_pad, TN) bf16 streamed tile

        # Aggregation over this node-column tile of the (symmetric) A_hat, then the
        # re-associated per-layer transform:  h_new^T[:, tile] = W'^T (h^T @ A_tile).
        h_old = hbuf_ref[read_slot]                                            # (H, N_pad) bf16
        agg = jnp.dot(h_old, a_tile, preferred_element_type=jnp.float32)       # (H, TN) f32
        z = jnp.dot(wt_ref[0], agg.astype(jnp.bfloat16),
                    preferred_element_type=jnp.float32)                        # (H, TN) f32
        pre = jnp.where(l == 0, agg, z)            # layer 0: W0 already folded into h0
        # folded conv bias + eval-mode BatchNorm, then ReLU; dropout = identity (eval)
        h_new = jnp.maximum(pre + bt_ref[0], 0.0).astype(jnp.bfloat16)         # (H, TN) bf16

        @pl.when(write_slot == 0)
        def _():
            hbuf_ref[0, :, pl.ds(start, tn)] = h_new

        @pl.when(write_slot == 1)
        def _():
            hbuf_ref[1, :, pl.ds(start, tn)] = h_new

        # Streamed global mean pool: accumulate this tile's contribution on the last layer.
        @pl.when(last_layer)
        def _():
            pool_ref[...] += jnp.dot(h_new, pt_ref[...],
                                     preferred_element_type=jnp.float32)       # (H, G_pad)

        # Final grid step: tiny MLP head on the pooled features, lane-dense output.
        @pl.when(last_layer & (t == n_t - 1))
        def _():
            z1 = jnp.dot(w1t_ref[...], pool_ref[...],
                         preferred_element_type=jnp.float32) + b1t_ref[...]
            z1 = jnp.maximum(z1, 0.0)
            out_ref[...] = jnp.dot(w2t_ref[...], z1,
                                   preferred_element_type=jnp.float32)

    return gnn_kernel


def _vmem_budget_bytes():
    kind = ""
    try:
        kind = jax.devices()[0].device_kind.lower()
    except Exception:
        pass
    if "v7" in kind or "7x" in kind:
        return 48 * 1024 * 1024        # v7x: 64 MiB physical VMEM -> leave headroom
    if "v5" in kind or "v6" in kind:
        return 100 * 1024 * 1024       # v5e / v6e: 128 MiB physical
    return 40 * 1024 * 1024            # unknown part: stay conservative


def _plan_tiles(n_pad, g_pad, h, budget):
    """Pick (tile width TN, A_hat residency) so estimated VMEM fits the budget."""
    slack = 4 * 1024 * 1024            # small operands, output, Mosaic internal scratch

    def fixed(tn):
        return (2 * h * n_pad * 2      # h0 input (double-buffered, bf16)
                + 2 * h * n_pad * 2    # hbuf scratch (2 slots, bf16)
                + h * g_pad * 4        # pooling accumulator (f32)
                + 2 * tn * g_pad * 2   # streamed pool-matrix tile (double-buffered, bf16)
                + slack)

    cands = [tn for tn in (1024, 512) if n_pad % tn == 0] or [n_pad]
    for resident in (True, False):
        for tn in cands:
            a_bytes = (2 * n_pad * n_pad * 2) if resident else (2 * n_pad * tn * 2)
            if fixed(tn) + a_bytes <= budget:
                return tn, resident
    return cands[-1], False


@functools.partial(jax.jit, static_argnames=("num_graphs",))
def gnn_forward(x, edge_index, batch, params, *, num_graphs):
    """x: (N, 1) f32 node features; edge_index: (2, E) int32; batch: (N,) int32."""
    N = x.shape[0]
    G = num_graphs
    H = HIDDEN
    L = NUM_LAYERS

    N_pad = max(NODE_ALIGN, ((N + NODE_ALIGN - 1) // NODE_ALIGN) * NODE_ALIGN)
    G_pad = ((G + LANE - 1) // LANE) * LANE
    budget = _vmem_budget_bytes()
    TN, resident = _plan_tiles(N_pad, G_pad, H, budget)

    # ---- glue: dense normalized adjacency A_hat = D^-1/2 (A+I) D^-1/2 ----
    adj = jnp.zeros((N, N), jnp.float32).at[edge_index[0], edge_index[1]].set(1.0)
    adj = jnp.maximum(adj, jnp.eye(N, dtype=jnp.float32))   # add only *missing* self-loops
    deg = jnp.sum(adj, axis=1)
    d_inv_sqrt = jnp.where(deg > 0, jax.lax.rsqrt(deg), 0.0)
    a_hat = d_inv_sqrt[:, None] * adj * d_inv_sqrt[None, :]
    a_hat = jnp.pad(a_hat, ((0, N_pad - N), (0, N_pad - N))).astype(jnp.bfloat16)

    # ---- glue: transposed mean-pool matrix P^T (N_pad, G_pad), bf16 ----
    onehot = (batch[:, None] == jnp.arange(G, dtype=batch.dtype)[None, :]).astype(jnp.float32)
    counts = jnp.maximum(jnp.sum(onehot, axis=0, keepdims=True), 1.0)
    p_t = jnp.pad(onehot / counts, ((0, N_pad - N), (0, G_pad - G))).astype(jnp.bfloat16)

    # ---- glue: fold eval-mode BatchNorm + conv bias into conv weights/biases ----
    s = params["bn_gamma"] * jax.lax.rsqrt(params["bn_var"] + BN_EPS)        # (L, H)
    b_fold = (params["conv_b"] - params["bn_mean"]) * s + params["bn_beta"]  # (L, H)
    bt = b_fold[:, :, None]                                                  # (L, H, 1)

    # layer 0: (N,1) @ (1,H) feature transform folded here (transposed, padded, bf16)
    w0f = params["conv_w"][0] * s[0][None, :]                                # (1, H)
    h0 = jnp.pad((x.astype(jnp.float32) @ w0f).T,
                 ((0, 0), (0, N_pad - N))).astype(jnp.bfloat16)              # (H, N_pad)

    # layers 1..L-1: folded + transposed weights (layer-0 slot is identity, never selected)
    wt_rows = [jnp.eye(H, dtype=jnp.float32)]
    for layer in range(1, L):
        wt_rows.append((params["conv_w"][layer] * s[layer][None, :]).T)
    wt = jnp.stack(wt_rows).astype(jnp.bfloat16)                             # (L, H, H)

    # ---- glue: transposed MLP head params (tiny, used once; kept f32) ----
    w1t = params["lin1_w"].T            # (H, H)
    b1t = params["lin1_b"][:, None]     # (H, 1)
    w2t = params["lin2_w"].T            # (1, H)

    a_spec = (pl.BlockSpec((N_pad, N_pad), lambda l, t: (0, 0)) if resident
              else pl.BlockSpec((N_pad, TN), lambda l, t: (0, t)))
    # pool tiles only advance on the last layer (stay on block 0 otherwise)
    pt_spec = pl.BlockSpec((TN, G_pad), lambda l, t: (jnp.where(l == L - 1, t, 0), 0))

    out = pl.pallas_call(
        _make_kernel(TN, resident),
        out_shape=jax.ShapeDtypeStruct((1, G_pad), jnp.float32),
        grid_spec=pltpu.PrefetchScalarGridSpec(
            num_scalar_prefetch=0,
            grid=(L, N_pad // TN),
            in_specs=[
                pl.BlockSpec((H, N_pad), lambda l, t: (0, 0)),      # h0 (resident, bf16)
                a_spec,                                             # A_hat (resident or streamed)
                pl.BlockSpec((1, H, H), lambda l, t: (l, 0, 0)),    # per-layer W'^T (bf16)
                pl.BlockSpec((1, H, 1), lambda l, t: (l, 0, 0)),    # per-layer folded bias
                pt_spec,                                            # P^T tiles (bf16)
                pl.BlockSpec((H, H), lambda l, t: (0, 0)),          # lin1 W^T
                pl.BlockSpec((H, 1), lambda l, t: (0, 0)),          # lin1 b
                pl.BlockSpec((1, H), lambda l, t: (0, 0)),          # lin2 W^T
            ],
            out_specs=pl.BlockSpec((1, G_pad), lambda l, t: (0, 0)),
            scratch_shapes=[
                pltpu.VMEM((2, H, N_pad), jnp.bfloat16),   # double-buffered layer features h^T
                pltpu.VMEM((H, G_pad), jnp.float32),       # streamed mean-pool accumulator
            ],
        ),
        compiler_params=pltpu.CompilerParams(
            dimension_semantics=("arbitrary", "arbitrary"),
            vmem_limit_bytes=budget,
        ),
    )(h0, a_hat, wt, bt, p_t, w1t, b1t, w2t)

    # lin2 bias folded here; slice off padding and return (G, 1)
    return out[:, :G].T + params["lin2_b"][None, :]


def init_params(key, hidden=HIDDEN, num_layers=NUM_LAYERS):
    H = hidden
    keys = jax.random.split(key, num_layers + 2)

    conv_w = []
    for l in range(num_layers):
        in_dim = 1 if l == 0 else H
        w = jax.random.normal(keys[l], (in_dim, H), jnp.float32) * (1.0 / jnp.sqrt(in_dim))
        conv_w.append(w)
    conv_b = jnp.zeros((num_layers, H), jnp.float32)          # GCNConv bias init = 0

    bn_gamma = jnp.ones((num_layers, H), jnp.float32)
    bn_beta = jnp.zeros((num_layers, H), jnp.float32)
    bn_mean = jnp.zeros((num_layers, H), jnp.float32)         # running stats (eval mode)
    bn_var = jnp.ones((num_layers, H), jnp.float32)

    lin1_w = jax.random.normal(keys[num_layers], (H, H), jnp.float32) * (1.0 / jnp.sqrt(H))
    lin1_b = jnp.zeros((H,), jnp.float32)
    lin2_w = jax.random.normal(keys[num_layers + 1], (H, 1), jnp.float32) * (1.0 / jnp.sqrt(H))
    lin2_b = jnp.zeros((1,), jnp.float32)

    return dict(conv_w=conv_w, conv_b=conv_b,
                bn_gamma=bn_gamma, bn_beta=bn_beta, bn_mean=bn_mean, bn_var=bn_var,
                lin1_w=lin1_w, lin1_b=lin1_b, lin2_w=lin2_w, lin2_b=lin2_b)


if __name__ == "__main__":
    key = jax.random.PRNGKey(0)
    k_feat, k_param = jax.random.split(key)

    N = 16   # nodes (8 per graph)
    G = 2    # graphs in the batch

    # deterministic node features (N, 1)
    x = jax.random.normal(k_feat, (N, 1), jnp.float32)

    # deterministic bidirectional ring edges inside each graph, (2, E)
    src, dst = [], []
    n_g = N // G
    for g in range(G):
        base = g * n_g
        for i in range(n_g):
            a, b = base + i, base + (i + 1) % n_g
            src += [a, b]
            dst += [b, a]
    edge_index = jnp.array([src, dst], dtype=jnp.int32)

    # batch assignment vector (which graph each node belongs to)
    batch = jnp.repeat(jnp.arange(G, dtype=jnp.int32), n_g)

    params = init_params(k_param)

    out = gnn_forward(x, edge_index, batch, params, num_graphs=G)
    out = jax.block_until_ready(out)
    assert out.shape == (G, 1) and out.dtype == jnp.float32
    print("KERNEL_OK")
</pallas_src>

<mosaic_0001>
module attributes {stable_mosaic.version = 11 : i64} {
  func.func @gnn_kernel(%arg0: i32, %arg1: i32, %arg2: memref<32x512xbf16, #tpu.memory_space<vmem>>, %arg3: memref<512x512xbf16, #tpu.memory_space<vmem>>, %arg4: memref<1x32x32xbf16, #tpu.memory_space<vmem>>, %arg5: memref<1x32x1xf32, #tpu.memory_space<vmem>>, %arg6: memref<512x128xbf16, #tpu.memory_space<vmem>>, %arg7: memref<32x32xf32, #tpu.memory_space<vmem>>, %arg8: memref<32x1xf32, #tpu.memory_space<vmem>>, %arg9: memref<1x32xf32, #tpu.memory_space<vmem>>, %arg10: memref<1x128xf32, #tpu.memory_space<vmem>>, %arg11: memref<2x32x512xbf16, #tpu.memory_space<vmem>>, %arg12: memref<32x128xf32, #tpu.memory_space<vmem>>) attributes {dimension_semantics = [#tpu.dimension_semantics<arbitrary>, #tpu.dimension_semantics<arbitrary>], iteration_bounds = array<i64: 4, 1>, scalar_prefetch = 0 : i64, scratch_operands = 2 : i64, tpu.core_type = #tpu.core_type<tc>, window_params = [{pipeline_mode = #tpu.pipeline_mode<synchronous>, transform_indices = @transform_0, window_bounds = array<i64: 32, 512>}, {pipeline_mode = #tpu.pipeline_mode<synchronous>, transform_indices = @transform_1, window_bounds = array<i64: 512, 512>}, {transform_indices = @transform_2, window_bounds = array<i64: 1, 32, 32>}, {transform_indices = @transform_3, window_bounds = array<i64: 1, 32, 1>}, {transform_indices = @transform_4, window_bounds = array<i64: 512, 128>}, {pipeline_mode = #tpu.pipeline_mode<synchronous>, transform_indices = @transform_5, window_bounds = array<i64: 32, 32>}, {pipeline_mode = #tpu.pipeline_mode<synchronous>, transform_indices = @transform_6, window_bounds = array<i64: 32, 1>}, {pipeline_mode = #tpu.pipeline_mode<synchronous>, transform_indices = @transform_7, window_bounds = array<i64: 1, 32>}, {pipeline_mode = #tpu.pipeline_mode<synchronous>, transform_indices = @transform_8, window_bounds = array<i64: 1, 128>}]} {
    %c3_i32 = arith.constant 3 : i32
    %0 = arith.cmpi eq, %arg0, %c3_i32 : i32
    %c2_i32 = arith.constant 2 : i32
    %c0_i32 = arith.constant 0 : i32
    %1 = arith.cmpi eq, %c2_i32, %c0_i32 : i32
    %c1_i32 = arith.constant 1 : i32
    %2 = arith.select %1, %c1_i32, %c2_i32 : i32
    %3 = arith.remsi %arg0, %2 : i32
    %c0_i32_0 = arith.constant 0 : i32
    %4 = arith.cmpi ne, %3, %c0_i32_0 : i32
    %c0_i32_1 = arith.constant 0 : i32
    %5 = arith.cmpi slt, %3, %c0_i32_1 : i32
    %c0_i32_2 = arith.constant 0 : i32
    %6 = arith.cmpi slt, %2, %c0_i32_2 : i32
    %7 = arith.xori %5, %6 : i1
    %8 = arith.andi %7, %4 : i1
    %9 = arith.addi %3, %2 : i32
    %10 = arith.select %8, %9, %3 : i32
    %c1_i32_3 = arith.constant 1 : i32
    %11 = arith.subi %c1_i32_3, %10 : i32
    %c0_i32_4 = arith.constant 0 : i32
    %12 = arith.cmpi eq, %arg0, %c0_i32_4 : i32
    %c0_i32_5 = arith.constant 0 : i32
    %13 = arith.cmpi eq, %arg1, %c0_i32_5 : i32
    %14 = arith.andi %12, %13 : i1
    %15 = arith.extui %14 : i1 to i32
    %c0_i32_6 = arith.constant 0 : i32
    %16 = arith.cmpi ne, %15, %c0_i32_6 : i32
    scf.if %16 {
      %c0_25 = arith.constant 0 : index
      %c0_26 = arith.constant 0 : index
      %50 = vector.load %arg2[%c0_25, %c0_26] : memref<32x512xbf16, #tpu.memory_space<vmem>>, vector<32x512xbf16>
      %c1 = arith.constant 1 : index
      %c0_27 = arith.constant 0 : index
      %c0_28 = arith.constant 0 : index
      %51 = vector.load %arg11[%c1, %c0_27, %c0_28] : memref<2x32x512xbf16, #tpu.memory_space<vmem>>, vector<1x32x512xbf16>
      %52 = vector.shape_cast %51 : vector<1x32x512xbf16> to vector<32x512xbf16>
      %53 = vector.shape_cast %50 : vector<32x512xbf16> to vector<1x32x512xbf16>
      tpu.vector_store %arg11[%c1, %c0_27, %c0_28], %53 {strides = array<i32>} : memref<2x32x512xbf16, #tpu.memory_space<vmem>>, vector<1x32x512xbf16>,
      %cst_29 = arith.constant 0.000000e+00 : f32
      %54 = vector.broadcast %cst_29 : f32 to vector<32x128xf32>
      %c0_30 = arith.constant 0 : index
      %c0_31 = arith.constant 0 : index
      %55 = vector.load %arg12[%c0_30, %c0_31] : memref<32x128xf32, #tpu.memory_space<vmem>>, vector<32x128xf32>
      tpu.vector_store %arg12[%c0_30, %c0_31], %54 {strides = array<i32>} : memref<32x128xf32, #tpu.memory_space<vmem>>, vector<32x128xf32>,
    } else {
    }
    %c512_i32 = arith.constant 512 : i32
    %17 = arith.muli %arg1, %c512_i32 : i32
    %18 = tpu.assume_multiple %17, 512 : i32
    %c0 = arith.constant 0 : index
    %19 = arith.index_cast %18 : i32 to index
    %20 = vector.load %arg3[%c0, %19] : memref<512x512xbf16, #tpu.memory_space<vmem>>, vector<512x512xbf16>
    %21 = arith.index_cast %11 : i32 to index
    %c0_7 = arith.constant 0 : index
    %c0_8 = arith.constant 0 : index
    %22 = vector.load %arg11[%21, %c0_7, %c0_8] : memref<2x32x512xbf16, #tpu.memory_space<vmem>>, vector<1x32x512xbf16>
    %23 = vector.shape_cast %22 : vector<1x32x512xbf16> to vector<32x512xbf16>
    %cst = arith.constant dense<0.000000e+00> : vector<32x512xf32>
    %24 = tpu.matmul %23, %20, %cst {dimension_numbers = #tpu.dot_dimension_numbers<[1], [0], [0], [1], [0, 0, 1, 1], [], []>} : vector<32x512xbf16>, vector<512x512xbf16>, vector<32x512xf32> -> vector<32x512xf32>
    %c0_9 = arith.constant 0 : index
    %c0_10 = arith.constant 0 : index
    %c0_11 = arith.constant 0 : index
    %25 = vector.load %arg4[%c0_9, %c0_10, %c0_11] : memref<1x32x32xbf16, #tpu.memory_space<vmem>>, vector<1x32x32xbf16>
    %26 = vector.shape_cast %25 : vector<1x32x32xbf16> to vector<32x32xbf16>
    %27 = arith.truncf %24 : vector<32x512xf32> to vector<32x512xbf16>
    %cst_12 = arith.constant dense<0.000000e+00> : vector<32x512xf32>
    %28 = tpu.matmul %26, %27, %cst_12 {dimension_numbers = #tpu.dot_dimension_numbers<[1], [0], [0], [1], [0, 0, 1, 1], [], []>} : vector<32x32xbf16>, vector<32x512xbf16>, vector<32x512xf32> -> vector<32x512xf32>
    %c0_i32_13 = arith.constant 0 : i32
    %29 = arith.cmpi eq, %arg0, %c0_i32_13 : i32
    %30 = arith.select %29, %24, %28 : vector<32x512xf32>
    %c0_14 = arith.constant 0 : index
    %c0_15 = arith.constant 0 : index
    %c0_16 = arith.constant 0 : index
    %31 = vector.load %arg5[%c0_14, %c0_15, %c0_16] : memref<1x32x1xf32, #tpu.memory_space<vmem>>, vector<1x32x1xf32>
    %32 = vector.shape_cast %31 : vector<1x32x1xf32> to vector<32x1xf32>
    %33 = vector.broadcast %32 : vector<32x1xf32> to vector<32x512xf32>
    %34 = arith.addf %30, %33 : vector<32x512xf32>
    %cst_17 = arith.constant 0.000000e+00 : f32
    %35 = vector.broadcast %cst_17 : f32 to vector<32x512xf32>
    %36 = arith.maximumf %34, %35 : vector<32x512xf32>
    %37 = arith.truncf %36 : vector<32x512xf32> to vector<32x512xbf16>
    %c0_i32_18 = arith.constant 0 : i32
    %38 = arith.cmpi eq, %10, %c0_i32_18 : i32
    %39 = arith.extui %38 : i1 to i32
    %c0_i32_19 = arith.constant 0 : i32
    %40 = arith.cmpi ne, %39, %c0_i32_19 : i32
    scf.if %40 {
      %c0_25 = arith.constant 0 : index
      %c0_26 = arith.constant 0 : index
      %50 = arith.index_cast %18 : i32 to index
      %51 = vector.load %arg11[%c0_25, %c0_26, %50] : memref<2x32x512xbf16, #tpu.memory_space<vmem>>, vector<1x32x512xbf16>
      %52 = vector.shape_cast %51 : vector<1x32x512xbf16> to vector<32x512xbf16>
      %53 = vector.shape_cast %37 : vector<32x512xbf16> to vector<1x32x512xbf16>
      tpu.vector_store %arg11[%c0_25, %c0_26, %50], %53 {strides = array<i32>} : memref<2x32x512xbf16, #tpu.memory_space<vmem>>, vector<1x32x512xbf16>,
    } else {
    }
    %c1_i32_20 = arith.constant 1 : i32
    %41 = arith.cmpi eq, %10, %c1_i32_20 : i32
    %42 = arith.extui %41 : i1 to i32
    %c0_i32_21 = arith.constant 0 : i32
    %43 = arith.cmpi ne, %42, %c0_i32_21 : i32
    scf.if %43 {
      %c1 = arith.constant 1 : index
      %c0_25 = arith.constant 0 : index
      %50 = arith.index_cast %18 : i32 to index
      %51 = vector.load %arg11[%c1, %c0_25, %50] : memref<2x32x512xbf16, #tpu.memory_space<vmem>>, vector<1x32x512xbf16>
      %52 = vector.shape_cast %51 : vector<1x32x512xbf16> to vector<32x512xbf16>
      %53 = vector.shape_cast %37 : vector<32x512xbf16> to vector<1x32x512xbf16>
      tpu.vector_store %arg11[%c1, %c0_25, %50], %53 {strides = array<i32>} : memref<2x32x512xbf16, #tpu.memory_space<vmem>>, vector<1x32x512xbf16>,
    } else {
    }
    %44 = arith.extui %0 : i1 to i32
    %c0_i32_22 = arith.constant 0 : i32
    %45 = arith.cmpi ne, %44, %c0_i32_22 : i32
    scf.if %45 {
      %c0_25 = arith.constant 0 : index
      %c0_26 = arith.constant 0 : index
      %50 = vector.load %arg12[%c0_25, %c0_26] : memref<32x128xf32, #tpu.memory_space<vmem>>, vector<32x128xf32>
      %c0_27 = arith.constant 0 : index
      %c0_28 = arith.constant 0 : index
      %51 = vector.load %arg6[%c0_27, %c0_28] : memref<512x128xbf16, #tpu.memory_space<vmem>>, vector<512x128xbf16>
      %cst_29 = arith.constant dense<0.000000e+00> : vector<32x128xf32>
      %52 = tpu.matmul %37, %51, %cst_29 {dimension_numbers = #tpu.dot_dimension_numbers<[1], [0], [0], [1], [0, 0, 1, 1], [], []>} : vector<32x512xbf16>, vector<512x128xbf16>, vector<32x128xf32> -> vector<32x128xf32>
      %53 = arith.addf %50, %52 : vector<32x128xf32>
      %c0_30 = arith.constant 0 : index
      %c0_31 = arith.constant 0 : index
      %54 = vector.load %arg12[%c0_30, %c0_31] : memref<32x128xf32, #tpu.memory_space<vmem>>, vector<32x128xf32>
      tpu.vector_store %arg12[%c0_30, %c0_31], %53 {strides = array<i32>} : memref<32x128xf32, #tpu.memory_space<vmem>>, vector<32x128xf32>,
    } else {
    }
    %c0_i32_23 = arith.constant 0 : i32
    %46 = arith.cmpi eq, %arg1, %c0_i32_23 : i32
    %47 = arith.andi %0, %46 : i1
    %48 = arith.extui %47 : i1 to i32
    %c0_i32_24 = arith.constant 0 : i32
    %49 = arith.cmpi ne, %48, %c0_i32_24 : i32
    scf.if %49 {
      %c0_25 = arith.constant 0 : index
      %c0_26 = arith.constant 0 : index
      %50 = vector.load %arg7[%c0_25, %c0_26] : memref<32x32xf32, #tpu.memory_space<vmem>>, vector<32x32xf32>
      %c0_27 = arith.constant 0 : index
      %c0_28 = arith.constant 0 : index
      %51 = vector.load %arg12[%c0_27, %c0_28] : memref<32x128xf32, #tpu.memory_space<vmem>>, vector<32x128xf32>
      %cst_29 = arith.constant dense<0.000000e+00> : vector<32x128xf32>
      %52 = tpu.matmul %50, %51, %cst_29 {dimension_numbers = #tpu.dot_dimension_numbers<[1], [0], [0], [1], [0, 0, 1, 1], [], []>} : vector<32x32xf32>, vector<32x128xf32>, vector<32x128xf32> -> vector<32x128xf32>
      %c0_30 = arith.constant 0 : index
      %c0_31 = arith.constant 0 : index
      %53 = vector.load %arg8[%c0_30, %c0_31] : memref<32x1xf32, #tpu.memory_space<vmem>>, vector<32x1xf32>
      %54 = vector.broadcast %53 : vector<32x1xf32> to vector<32x128xf32>
      %55 = arith.addf %52, %54 : vector<32x128xf32>
      %cst_32 = arith.constant 0.000000e+00 : f32
      %56 = vector.broadcast %cst_32 : f32 to vector<32x128xf32>
      %57 = arith.maximumf %55, %56 : vector<32x128xf32>
      %c0_33 = arith.constant 0 : index
      %c0_34 = arith.constant 0 : index
      %58 = vector.load %arg9[%c0_33, %c0_34] : memref<1x32xf32, #tpu.memory_space<vmem>>, vector<1x32xf32>
      %cst_35 = arith.constant dense<0.000000e+00> : vector<1x128xf32>
      %59 = tpu.matmul %58, %57, %cst_35 {dimension_numbers = #tpu.dot_dimension_numbers<[1], [0], [0], [1], [0, 0, 1, 1], [], []>} : vector<1x32xf32>, vector<32x128xf32>, vector<1x128xf32> -> vector<1x128xf32>
      %c0_36 = arith.constant 0 : index
      %c0_37 = arith.constant 0 : index
      %60 = vector.load %arg10[%c0_36, %c0_37] : memref<1x128xf32, #tpu.memory_space<vmem>>, vector<1x128xf32>
      tpu.vector_store %arg10[%c0_36, %c0_37], %59 {strides = array<i32>} : memref<1x128xf32, #tpu.memory_space<vmem>>, vector<1x128xf32>,
    } else {
    }
    return
  }
  func.func @transform_0(%arg0: i32, %arg1: i32) -> (i32, i32) {
    %c0_i32 = arith.constant 0 : i32
    %c0_i32_0 = arith.constant 0 : i32
    %c0_i32_1 = arith.constant 0 : i32
    return %c0_i32, %c0_i32_0 : i32, i32
  }
  func.func @transform_1(%arg0: i32, %arg1: i32) -> (i32, i32) {
    %c0_i32 = arith.constant 0 : i32
    %c0_i32_0 = arith.constant 0 : i32
    %c0_i32_1 = arith.constant 0 : i32
    return %c0_i32, %c0_i32_0 : i32, i32
  }
  func.func @transform_2(%arg0: i32, %arg1: i32) -> (i32, i32, i32) {
    %c0_i32 = arith.constant 0 : i32
    %c0_i32_0 = arith.constant 0 : i32
    %c0_i32_1 = arith.constant 0 : i32
    return %arg0, %c0_i32, %c0_i32_0 : i32, i32, i32
  }
  func.func @transform_3(%arg0: i32, %arg1: i32) -> (i32, i32, i32) {
    %c0_i32 = arith.constant 0 : i32
    %c0_i32_0 = arith.constant 0 : i32
    %c0_i32_1 = arith.constant 0 : i32
    return %arg0, %c0_i32, %c0_i32_0 : i32, i32, i32
  }
  func.func @transform_4(%arg0: i32, %arg1: i32) -> (i32, i32) {
    %c3_i32 = arith.constant 3 : i32
    %0 = arith.cmpi eq, %arg0, %c3_i32 : i32
    %c0_i32 = arith.constant 0 : i32
    %1 = arith.select %0, %arg1, %c0_i32 : i32
    %c0_i32_0 = arith.constant 0 : i32
    %c0_i32_1 = arith.constant 0 : i32
    return %1, %c0_i32_0 : i32, i32
  }
  func.func @transform_5(%arg0: i32, %arg1: i32) -> (i32, i32) {
    %c0_i32 = arith.constant 0 : i32
    %c0_i32_0 = arith.constant 0 : i32
    %c0_i32_1 = arith.constant 0 : i32
    return %c0_i32, %c0_i32_0 : i32, i32
  }
  func.func @transform_6(%arg0: i32, %arg1: i32) -> (i32, i32) {
    %c0_i32 = arith.constant 0 : i32
    %c0_i32_0 = arith.constant 0 : i32
    %c0_i32_1 = arith.constant 0 : i32
    return %c0_i32, %c0_i32_0 : i32, i32
  }
  func.func @transform_7(%arg0: i32, %arg1: i32) -> (i32, i32) {
    %c0_i32 = arith.constant 0 : i32
    %c0_i32_0 = arith.constant 0 : i32
    %c0_i32_1 = arith.constant 0 : i32
    return %c0_i32, %c0_i32_0 : i32, i32
  }
  func.func @transform_8(%arg0: i32, %arg1: i32) -> (i32, i32) {
    %c0_i32 = arith.constant 0 : i32
    %c0_i32_0 = arith.constant 0 : i32
    %c0_i32_1 = arith.constant 0 : i32
    return %c0_i32, %c0_i32_0 : i32, i32
  }
}

</mosaic_0001>

<llo_original>
// kernel: gnn_forward.1
$region0: #{gnn_forward.1}
  #allocation0 [shape = 'u32[]', space=smem, size = 0x4, offset = 0x4, fixed_abs, tag = 'smem constant byte address 0x4 - core index']
  #allocation1 [shape = 'u32[144,128]{1,0:T(1,128)}', space=vmem, size = 0x12000, scoped, tag = 'internal scratch']
  #allocation2 [shape = 'bf16[2,32,512]{2,1,0:T(8,128)(2,1)}', space=vmem, size = 0x10000, scoped, tag = 'scratch operand']
  #allocation3 [shape = 'f32[32,128]{1,0:T(8,128)}', space=vmem, size = 0x4000, scoped, tag = 'scratch operand']
  %s0 = inlined_call_operand.vmem [shape: bf16[32,512], index: 0, kind: input, shape index: {}]
  %s1 = inlined_call_operand.vmem [shape: bf16[512,512], index: 1, kind: input, shape index: {}]
  %s2 = inlined_call_operand.vmem [shape: bf16[4,32,32], index: 2, kind: input, shape index: {}]
  %s3 = inlined_call_operand.vmem [shape: f32[4,32,1], index: 3, kind: input, shape index: {}]
  %s4 = inlined_call_operand.vmem [shape: bf16[512,128], index: 4, kind: input, shape index: {}]
  %s5 = inlined_call_operand.vmem [shape: f32[32,32], index: 5, kind: input, shape index: {}]
  %s6 = inlined_call_operand.vmem [shape: f32[32,1], index: 6, kind: input, shape index: {}]
  %s7 = inlined_call_operand.vmem [shape: f32[1,32], index: 7, kind: input, shape index: {}]
  %s8 = inlined_call_operand.vmem [shape: f32[1,128], index: 8, kind: output, shape index: {}]
  %s9 = sld [smem:[#allocation0]]
  $region85: #{gnn_forward.1} parent=0
    _
  %s11 = ssub.s32 1, %s9
  %s12 = scalar_select 0, %s11, %s9
  loop: start=0, step=1, limit=6
  $region2: #{gnn_forward.1} parent=0 // loop_pre_header
    _
  $region3: #{gnn_forward.1} parent=0 // loop_header
    %s14 = sphi 0, %s18
    %p15 = scmp.ge.s32.totalorder %s14, 6
    %s21 = sphi 0, %s33
    %s22 = sphi 0, %s29
    %s23 = sphi 0, %s21
    %s24 = sphi 0, %s22
    %s25 = sphi 0, %s23
    %s26 = sphi 0, %s24
    %s34 = sphi 0, %s34
    %s36 = sphi 0, %s34
    %s37 = sphi 0, %s36
    %s51 = sphi 0, %s37
    %s55 = sphi 0, %s55
    %s57 = sphi 0, %s55
    %s58 = sphi 0, %s57
    %s72 = sphi 0, %s58
    %s78 = sphi 0, %s80
    %s81 = sphi 0, %s78
    %s82 = sphi 0, %s81
    %s98 = sphi 0, %s82
    %s104 = sphi 0, %s106
    %s107 = sphi 0, %s104
    %s108 = sphi 0, %s107
    %s124 = sphi 0, %s108
    %s134 = sphi 0, %s136
    %s137 = sphi 0, %s134
    %s138 = sphi 0, %s137
    %s154 = sphi 0, %s138
    %s158 = sphi 0, %s158
    %s160 = sphi 0, %s158
    %s161 = sphi 0, %s160
    %s175 = sphi 0, %s161
    %s179 = sphi 0, %s179
    %s181 = sphi 0, %s179
    %s182 = sphi 0, %s181
    %s196 = sphi 0, %s182
    %s200 = sphi 0, %s200
    %s202 = sphi 0, %s200
    %s203 = sphi 0, %s202
    %s217 = sphi 0, %s203
    %s221 = sphi 0, %s221
    %s223 = sphi 0, %s221
    %s224 = sphi 0, %s223
    %s238 = sphi 0, %s224
  $region4: #{gnn_forward.1} parent=0 // loop_header_branch
    %17 = sbr.rel (%p15) target = $region8
  $region5: #{gnn_forward.1} parent=0 // loop_body
    %s19 = ssub.s32 %s14, 1
    %s20 = ssub.s32 %s14, 2
    %s27 = sadd.s32 1, %s22
    %p28 = scmp.ge.s32.totalorder %s27, 1
    %s29 = scalar_select %p28, 0, %s27
    %s30 = sadd.s32 1, %s21
    %s31 = scalar_select %p28, %s30, %s21
    %p32 = scmp.ge.s32.totalorder %s31, 4
    %s33 = scalar_select %p32, 0, %s31
    %s35 = sadd.s32 %s34, 1
    %p38 = scmp.eq.s32.totalorder %s14, 3
    %p39 = scmp.ne.s32.totalorder %s34, %s36
    %p40 = scmp.eq.s32.totalorder %s14, 0
    %p41 = por %p39, %p40
    %p42 = scmp.ne.s32.totalorder %s34, %s36
    %p43 = scmp.eq.s32.totalorder %s19, 3
    %p44 = por %p42, %p43
    %p45 = scmp.ne.s32.totalorder %s36, %s37
    %p46 = scmp.eq.s32.totalorder %s19, 0
    %p47 = por %p45, %p46
    %p48 = scmp.ne.s32.totalorder %s36, %s37
    %p49 = scmp.eq.s32.totalorder %s20, 3
    %p50 = por %p48, %p49
    %p52 = scmp.ne.s32.totalorder %s37, %s51
    %p53 = scmp.eq.s32.totalorder %s20, 0
    %p54 = por %p52, %p53
    %s56 = sadd.s32 %s55, 1
    %p59 = scmp.eq.s32.totalorder %s14, 3
    %p60 = scmp.ne.s32.totalorder %s55, %s57
    %p61 = scmp.eq.s32.totalorder %s14, 0
    %p62 = por %p60, %p61
    %p63 = scmp.ne.s32.totalorder %s55, %s57
    %p64 = scmp.eq.s32.totalorder %s19, 3
    %p65 = por %p63, %p64
    %p66 = scmp.ne.s32.totalorder %s57, %s58
    %p67 = scmp.eq.s32.totalorder %s19, 0
    %p68 = por %p66, %p67
    %p69 = scmp.ne.s32.totalorder %s57, %s58
    %p70 = scmp.eq.s32.totalorder %s20, 3
    %p71 = por %p69, %p70
    %p73 = scmp.ne.s32.totalorder %s58, %s72
    %p74 = scmp.eq.s32.totalorder %s20, 0
    %p75 = por %p73, %p74
    %s76 = ssub.s32 %s21, %s33
    %p77 = scmp.eq.s32.totalorder %s76, 0
    %s79 = sadd.s32 %s78, 1
    %s80 = scalar_select %p77, %s78, %s79
    %p83 = pneg %p77
    %p84 = scmp.eq.s32.totalorder %s14, 3
    %p85 = por %p83, %p84
    %p86 = scmp.ne.s32.totalorder %s78, %s81
    %p87 = scmp.eq.s32.totalorder %s14, 0
    %p88 = por %p86, %p87
    %p89 = scmp.ne.s32.totalorder %s78, %s81
    %p90 = scmp.eq.s32.totalorder %s19, 3
    %p91 = por %p89, %p90
    %p92 = scmp.ne.s32.totalorder %s81, %s82
    %p93 = scmp.eq.s32.totalorder %s19, 0
    %p94 = por %p92, %p93
    %p95 = scmp.ne.s32.totalorder %s81, %s82
    %p96 = scmp.eq.s32.totalorder %s20, 3
    %p97 = por %p95, %p96
    %p99 = scmp.ne.s32.totalorder %s82, %s98
    %p100 = scmp.eq.s32.totalorder %s20, 0
    %p101 = por %p99, %p100
    %s102 = ssub.s32 %s21, %s33
    %p103 = scmp.eq.s32.totalorder %s102, 0
    %s105 = sadd.s32 %s104, 1
    %s106 = scalar_select %p103, %s104, %s105
    %p109 = pneg %p103
    %p110 = scmp.eq.s32.totalorder %s14, 3
    %p111 = por %p109, %p110
    %p112 = scmp.ne.s32.totalorder %s104, %s107
    %p113 = scmp.eq.s32.totalorder %s14, 0
    %p114 = por %p112, %p113
    %p115 = scmp.ne.s32.totalorder %s104, %s107
    %p116 = scmp.eq.s32.totalorder %s19, 3
    %p117 = por %p115, %p116
    %p118 = scmp.ne.s32.totalorder %s107, %s108
    %p119 = scmp.eq.s32.totalorder %s19, 0
    %p120 = por %p118, %p119
    %p121 = scmp.ne.s32.totalorder %s107, %s108
    %p122 = scmp.eq.s32.totalorder %s20, 3
    %p123 = por %p121, %p122
    %p125 = scmp.ne.s32.totalorder %s108, %s124
    %p126 = scmp.eq.s32.totalorder %s20, 0
    %p127 = por %p125, %p126
    %p128 = scmp.eq.s32.totalorder %s21, 3
    %s129 = scalar_select %p128, %s22, 0
    %p130 = scmp.eq.s32.totalorder %s33, 3
    %s131 = scalar_select %p130, %s29, 0
    %s132 = ssub.s32 %s129, %s131
    %p133 = scmp.eq.s32.totalorder %s132, 0
    %s135 = sadd.s32 %s134, 1
    %s136 = scalar_select %p133, %s134, %s135
    %p139 = pneg %p133
    %p140 = scmp.eq.s32.totalorder %s14, 3
    %p141 = por %p139, %p140
    %p142 = scmp.ne.s32.totalorder %s134, %s137
    %p143 = scmp.eq.s32.totalorder %s14, 0
    %p144 = por %p142, %p143
    %p145 = scmp.ne.s32.totalorder %s134, %s137
    %p146 = scmp.eq.s32.totalorder %s19, 3
    %p147 = por %p145, %p146
    %p148 = scmp.ne.s32.totalorder %s137, %s138
    %p149 = scmp.eq.s32.totalorder %s19, 0
    %p150 = por %p148, %p149
    %p151 = scmp.ne.s32.totalorder %s137, %s138
    %p152 = scmp.eq.s32.totalorder %s20, 3
    %p153 = por %p151, %p152
    %p155 = scmp.ne.s32.totalorder %s138, %s154
    %p156 = scmp.eq.s32.totalorder %s20, 0
    %p157 = por %p155, %p156
    %s159 = sadd.s32 %s158, 1
    %p162 = scmp.eq.s32.totalorder %s14, 3
    %p163 = scmp.ne.s32.totalorder %s158, %s160
    %p164 = scmp.eq.s32.totalorder %s14, 0
    %p165 = por %p163, %p164
    %p166 = scmp.ne.s32.totalorder %s158, %s160
    %p167 = scmp.eq.s32.totalorder %s19, 3
    %p168 = por %p166, %p167
    %p169 = scmp.ne.s32.totalorder %s160, %s161
    %p170 = scmp.eq.s32.totalorder %s19, 0
    %p171 = por %p169, %p170
    %p172 = scmp.ne.s32.totalorder %s160, %s161
    %p173 = scmp.eq.s32.totalorder %s20, 3
    %p174 = por %p172, %p173
    %p176 = scmp.ne.s32.totalorder %s161, %s175
    %p177 = scmp.eq.s32.totalorder %s20, 0
    %p178 = por %p176, %p177
    %s180 = sadd.s32 %s179, 1
    %p183 = scmp.eq.s32.totalorder %s14, 3
    %p184 = scmp.ne.s32.totalorder %s179, %s181
    %p185 = scmp.eq.s32.totalorder %s14, 0
    %p186 = por %p184, %p185
    %p187 = scmp.ne.s32.totalorder %s179, %s181
    %p188 = scmp.eq.s32.totalorder %s19, 3
    %p189 = por %p187, %p188
    %p190 = scmp.ne.s32.totalorder %s181, %s182
    %p191 = scmp.eq.s32.totalorder %s19, 0
    %p192 = por %p190, %p191
    %p193 = scmp.ne.s32.totalorder %s181, %s182
    %p194 = scmp.eq.s32.totalorder %s20, 3
    %p195 = por %p193, %p194
    %p197 = scmp.ne.s32.totalorder %s182, %s196
    %p198 = scmp.eq.s32.totalorder %s20, 0
    %p199 = por %p197, %p198
    %s201 = sadd.s32 %s200, 1
    %p204 = scmp.eq.s32.totalorder %s14, 3
    %p205 = scmp.ne.s32.totalorder %s200, %s202
    %p206 = scmp.eq.s32.totalorder %s14, 0
    %p207 = por %p205, %p206
    %p208 = scmp.ne.s32.totalorder %s200, %s202
    %p209 = scmp.eq.s32.totalorder %s19, 3
    %p210 = por %p208, %p209
    %p211 = scmp.ne.s32.totalorder %s202, %s203
    %p212 = scmp.eq.s32.totalorder %s19, 0
    %p213 = por %p211, %p212
    %p214 = scmp.ne.s32.totalorder %s202, %s203
    %p215 = scmp.eq.s32.totalorder %s20, 3
    %p216 = por %p214, %p215
    %p218 = scmp.ne.s32.totalorder %s203, %s217
    %p219 = scmp.eq.s32.totalorder %s20, 0
    %p220 = por %p218, %p219
    %s222 = sadd.s32 %s221, 1
    %p225 = scmp.eq.s32.totalorder %s14, 3
    %p226 = scmp.ne.s32.totalorder %s221, %s223
    %p227 = scmp.eq.s32.totalorder %s14, 0
    %p228 = por %p226, %p227
    %p229 = scmp.ne.s32.totalorder %s221, %s223
    %p230 = scmp.eq.s32.totalorder %s19, 3
    %p231 = por %p229, %p230
    %p232 = scmp.ne.s32.totalorder %s223, %s224
    %p233 = scmp.eq.s32.totalorder %s19, 0
    %p234 = por %p232, %p233
    %p235 = scmp.ne.s32.totalorder %s223, %s224
    %p236 = scmp.eq.s32.totalorder %s20, 3
    %p237 = por %p235, %p236
    %p239 = scmp.ne.s32.totalorder %s224, %s238
    %p240 = scmp.eq.s32.totalorder %s20, 0
    %p241 = por %p239, %p240
    %p242 = scmp.le.s32.totalorder 1, %s14
    %p243 = scmp.lt.s32.totalorder %s14, 5
    %p244 = pnand %p242, %p243
    %p245 = pneg %p244
    // Predicated region
    $region9: #{gnn_forward.1} parent=5 // pred_check
      _
    $region10: #{gnn_forward.1} parent=5 // pred_check_branch
      %247 = sbr.rel (%p244) target = $region12
    $region11: #{gnn_forward.1} parent=5 // pred_region
      %s248 = ssub.s32 %s14, 1
      // Predicated region
      $region13: #{gnn_forward.1} parent=11 // pred_check
        %p249 = pneg %p47
      $region14: #{gnn_forward.1} parent=11 // pred_check_branch
        %251 = sbr.rel (%p249) target = $region16
      $region15: #{gnn_forward.1} parent=11 // pred_region
        _
      $region16: #{gnn_forward.1} parent=11 // pred_fallthru
        _
      // Predicated region
      $region17: #{gnn_forward.1} parent=11 // pred_check
        %p252 = pneg %p68
      $region18: #{gnn_forward.1} parent=11 // pred_check_branch
        %254 = sbr.rel (%p252) target = $region20
      $region19: #{gnn_forward.1} parent=11 // pred_region
        _
      $region20: #{gnn_forward.1} parent=11 // pred_fallthru
        _
      // Predicated region
      $region21: #{gnn_forward.1} parent=11 // pred_check
        %p255 = pneg %p171
      $region22: #{gnn_forward.1} parent=11 // pred_check_branch
        %257 = sbr.rel (%p255) target = $region24
      $region23: #{gnn_forward.1} parent=11 // pred_region
        _
      $region24: #{gnn_forward.1} parent=11 // pred_fallthru
        _
      // Predicated region
      $region25: #{gnn_forward.1} parent=11 // pred_check
        %p258 = pneg %p192
      $region26: #{gnn_forward.1} parent=11 // pred_check_branch
        %260 = sbr.rel (%p258) target = $region28
      $region27: #{gnn_forward.1} parent=11 // pred_region
        _
      $region28: #{gnn_forward.1} parent=11 // pred_fallthru
        _
      // Predicated region
      $region29: #{gnn_forward.1} parent=11 // pred_check
        %p261 = pneg %p213
      $region30: #{gnn_forward.1} parent=11 // pred_check_branch
        %263 = sbr.rel (%p261) target = $region32
      $region31: #{gnn_forward.1} parent=11 // pred_region
        _
      $region32: #{gnn_forward.1} parent=11 // pred_fallthru
        _
    $region12: #{gnn_forward.1} parent=5 // pred_fallthru
      _
    %p264 = scmp.lt.s32.totalorder %s14, 4
    // Predicated region
    $region33: #{gnn_forward.1} parent=5 // pred_check
      %p265 = pneg %p264
    $region34: #{gnn_forward.1} parent=5 // pred_check_branch
      %267 = sbr.rel (%p265) target = $region36
    $region35: #{gnn_forward.1} parent=5 // pred_region
      // Predicated region
      $region37: #{gnn_forward.1} parent=35 // pred_check
        %p268 = pneg %p88
      $region38: #{gnn_forward.1} parent=35 // pred_check_branch
        %270 = sbr.rel (%p268) target = $region40
      $region39: #{gnn_forward.1} parent=35 // pred_region
        %p271 = scmp.lt.s32.totalorder %s21, 3
        %s272 = scalar_select %p271, %s21, 3
        %s273 = smul.addr %s272, 4
        %s274 = smul.addr %s273, 4
        %s275 = scalar_lea.vmem %s2, %s274
      $region40: #{gnn_forward.1} parent=35 // pred_fallthru
        _
      // Predicated region
      $region41: #{gnn_forward.1} parent=35 // pred_check
        %p276 = pneg %p114
      $region42: #{gnn_forward.1} parent=35 // pred_check_branch
        %278 = sbr.rel (%p276) target = $region44
      $region43: #{gnn_forward.1} parent=35 // pred_region
        %p279 = scmp.lt.s32.totalorder %s21, 3
        %s280 = scalar_select %p279, %s21, 3
        %s281 = smul.addr %s280, 4
        %s282 = smul.addr %s281, 8
        %s283 = scalar_lea.vmem %s3, %s282
      $region44: #{gnn_forward.1} parent=35 // pred_fallthru
        _
      // Predicated region
      $region45: #{gnn_forward.1} parent=35 // pred_check
        %p284 = pneg %p144
      $region46: #{gnn_forward.1} parent=35 // pred_check_branch
        %286 = sbr.rel (%p284) target = $region48
      $region47: #{gnn_forward.1} parent=35 // pred_region
        %p287 = scmp.eq.s32.totalorder %s21, 3
        %s288 = scalar_select %p287, %s22, 0
        %s289 = smul.u32 64, %s288
        %p290 = scmp.lt.s32.totalorder %s289, 63
        %s291 = scalar_select %p290, %s289, 63
        %s292 = smul.addr %s291, 4
        %s293 = scalar_lea.vmem %s4, %s292
        %p294 = scmp.eq.s32.totalorder %s21, 3
        %s295 = scalar_select %p294, %s22, 0
        %s296 = smul.u32 64, %s295
      $region48: #{gnn_forward.1} parent=35 // pred_fallthru
        _
    $region36: #{gnn_forward.1} parent=5 // pred_fallthru
      _
    %p297 = scmp.le.s32.totalorder 1, %s14
    %p298 = scmp.lt.s32.totalorder %s14, 5
    %p299 = pnand %p297, %p298
    %p300 = pneg %p299
    // Predicated region
    $region49: #{gnn_forward.1} parent=5 // pred_check
      _
    $region50: #{gnn_forward.1} parent=5 // pred_check_branch
      %302 = sbr.rel (%p299) target = $region52
    $region51: #{gnn_forward.1} parent=5 // pred_region
      %s303 = ssub.s32 %s14, 1
      %p304 = pneg %p47
      %p305 = pneg %p44
      %p306 = pneg %p68
      %p307 = pneg %p65
      %p308 = scmp.lt.s32.totalorder %s23, 3
      %s309 = scalar_select %p308, %s23, 3
      %s310 = smul.addr %s309, 4
      %s311 = smul.addr %s310, 4
      %s312 = scalar_lea.vmem %s2, %s311
      %p313 = pneg %p94
      %p314 = pneg %p91
      %p315 = scmp.lt.s32.totalorder %s23, 3
      %s316 = scalar_select %p315, %s23, 3
      %s317 = smul.addr %s316, 4
      %s318 = smul.addr %s317, 8
      %s319 = scalar_lea.vmem %s3, %s318
      %p320 = pneg %p120
      %p321 = pneg %p117
      %p322 = scmp.eq.s32.totalorder %s23, 3
      %s323 = scalar_select %p322, %s24, 0
      %s324 = smul.u32 64, %s323
      %p325 = scmp.lt.s32.totalorder %s324, 63
      %s326 = scalar_select %p325, %s324, 63
      %s327 = smul.addr %s326, 4
      %s328 = scalar_lea.vmem %s4, %s327
      %p329 = pneg %p150
      %p330 = pneg %p147
      %p331 = pneg %p171
      %p332 = pneg %p168
      %p333 = pneg %p192
      %p334 = pneg %p189
      %p335 = pneg %p213
      %p336 = pneg %p210
      %p337 = pneg %p234
      %p338 = pneg %p231
      %p339 = scmp.lt.s32.totalorder %s23, 3
      %s340 = scalar_select %p339, %s23, 3
      %s341 = smul.addr %s340, 4
      %s342 = smul.addr %s341, 4
      %s343 = scalar_lea.vmem %s2, %s342
      %p344 = scmp.lt.s32.totalorder %s23, 3
      %s345 = scalar_select %p344, %s23, 3
      %s346 = smul.addr %s345, 4
      %s347 = smul.addr %s346, 8
      %s348 = scalar_lea.vmem %s3, %s347
      %p349 = scmp.eq.s32.totalorder %s23, 3
      %s350 = scalar_select %p349, %s24, 0
      %s351 = smul.u32 64, %s350
      %p352 = scmp.lt.s32.totalorder %s351, 63
      %s353 = scalar_select %p352, %s351, 63
      %s354 = smul.addr %s353, 4
      %s355 = scalar_lea.vmem %s4, %s354
      %p356 = scmp.eq.s32.totalorder %s23, 3
      %s357 = scalar_select %p356, %s24, 0
      %s358 = smul.u32 64, %s357
      %p360 = scmp.eq.s32.totalorder %s23, 3
      %p361 = scmp.lt.s32.totalorder %s23, 0
      %s362 = ssub.s32 0, %s23
      %s363 = scalar_select %p361, %s362, %s23
      %s364 = sand.u32 %s363, 1
      %s365 = ssub.s32 0, %s364
      %s366 = scalar_select %p361, %s365, %s364
      %p367 = scmp.ne.s32.totalorder %s366, 0
      %p368 = scmp.lt.s32.totalorder %s366, 0
      %p369 = pnand %p368, %p367
      %p370 = pneg %p369
      %s371 = sadd.s32 %s366, 2
      %s372 = scalar_select %p370, %s371, %s366
      %s373 = ssub.s32 1, %s372
      %p374 = scmp.eq.s32.totalorder %s23, 0
      %p375 = scmp.eq.s32.totalorder %s24, 0
      %p376 = pnand %p374, %p375
      %p377 = pneg %p376
      // Predicated region
      $region53: #{gnn_forward.1} parent=51 // pred_check
        _
      $region54: #{gnn_forward.1} parent=51 // pred_check_branch
        %379 = sbr.rel (%p376) target = $region56
      $region55: #{gnn_forward.1} parent=51 // pred_region
        %v380 = vld [vmem:[%s0] sm:$0xff]
        %v381 = vld [vmem:[%s0 + $0x8] sm:$0xff]
        %v382 = vld [vmem:[%s0 + $0x10] sm:$0xff]
        %v383 = vld [vmem:[%s0 + $0x18] sm:$0xff]
        %v384 = vld [vmem:[%s0 + $0x20] sm:$0xff]
        %v385 = vld [vmem:[%s0 + $0x28] sm:$0xff]
        %v386 = vld [vmem:[%s0 + $0x30] sm:$0xff]
        %v387 = vld [vmem:[%s0 + $0x38] sm:$0xff]
        %s388 = scalar_lea.vmem [#allocation2], 64
        %389 = vst [vmem:[%s388] sm:$0xff] %v380
        %390 = vst [vmem:[%s388 + $0x8] sm:$0xff] %v381
        %391 = vst [vmem:[%s388 + $0x10] sm:$0xff] %v382
        %392 = vst [vmem:[%s388 + $0x18] sm:$0xff] %v383
        %393 = vst [vmem:[%s388 + $0x20] sm:$0xff] %v384
        %394 = vst [vmem:[%s388 + $0x28] sm:$0xff] %v385
        %395 = vst [vmem:[%s388 + $0x30] sm:$0xff] %v386
        %396 = vst [vmem:[%s388 + $0x38] sm:$0xff] %v387
        %397 = vst [vmem:[#allocation3] sm:$0xff] 0.0
        %398 = vst [vmem:[#allocation3 + $0x8] sm:$0xff] 0.0
        %399 = vst [vmem:[#allocation3 + $0x10] sm:$0xff] 0.0
        %400 = vst [vmem:[#allocation3 + $0x18] sm:$0xff] 0.0
      $region56: #{gnn_forward.1} parent=51 // pred_fallthru
        _
      %s401 = smul.u32 %s24, 512
      %s402 = sshra.s32 %s401, 7
      %s403 = sand.u32 %s401, 127
      %s404 = smul.addr %s402, 4
      %s405 = scalar_lea.vmem %s1, %s404
      %v406 = vld [vmem:[%s405] sm:$0xff]
      %v407 = vld [vmem:[%s405 + $0x8] sm:$0xff]
      %v408 = vld [vmem:[%s405 + $0x10] sm:$0xff]
      %v409 = vld [vmem:[%s405 + $0x18] sm:$0xff]
      %v410 = vld [vmem:[%s405 + $0x20] sm:$0xff]
      %v411 = vld [vmem:[%s405 + $0x28] sm:$0xff]
      %v412 = vld [vmem:[%s405 + $0x30] sm:$0xff]
      %v413 = vld [vmem:[%s405 + $0x38] sm:$0xff]
      %v414 = vld [vmem:[%s405 + $0x40] sm:$0xff]
      %v415 = vld [vmem:[%s405 + $0x48] sm:$0xff]
      %v416 = vld [vmem:[%s405 + $0x50] sm:$0xff]
      %v417 = vld [vmem:[%s405 + $0x58] sm:$0xff]
      %v418 = vld [vmem:[%s405 + $0x60] sm:$0xff]
      %v419 = vld [vmem:[%s405 + $0x68] sm:$0xff]
      %v420 = vld [vmem:[%s405 + $0x70] sm:$0xff]
      %v421 = vld [vmem:[%s405 + $0x78] sm:$0xff]
      %v422 = vld [vmem:[%s405 + $0x80] sm:$0xff]
      %v423 = vld [vmem:[%s405 + $0x88] sm:$0xff]
      %v424 = vld [vmem:[%s405 + $0x90] sm:$0xff]
      %v425 = vld [vmem:[%s405 + $0x98] sm:$0xff]
      %v426 = vld [vmem:[%s405 + $0xa0] sm:$0xff]
      %v427 = vld [vmem:[%s405 + $0xa8] sm:$0xff]
      %v428 = vld [vmem:[%s405 + $0xb0] sm:$0xff]
      %v429 = vld [vmem:[%s405 + $0xb8] sm:$0xff]
      %v430 = vld [vmem:[%s405 + $0xc0] sm:$0xff]
      %v431 = vld [vmem:[%s405 + $0xc8] sm:$0xff]
      %v432 = vld [vmem:[%s405 + $0xd0] sm:$0xff]
      %v433 = vld [vmem:[%s405 + $0xd8] sm:$0xff]
      %v434 = vld [vmem:[%s405 + $0xe0] sm:$0xff]
      %v435 = vld [vmem:[%s405 + $0xe8] sm:$0xff]
      %v436 = vld [vmem:[%s405 + $0xf0] sm:$0xff]
      %v437 = vld [vmem:[%s405 + $0xf8] sm:$0xff]
      %v438 = vld [vmem:[%s405 + $0x100] sm:$0xff]
      %v439 = vld [vmem:[%s405 + $0x108] sm:$0xff]
      %v440 = vld [vmem:[%s405 + $0x110] sm:$0xff]
      %v441 = vld [vmem:[%s405 + $0x118] sm:$0xff]
      %v442 = vld [vmem:[%s405 + $0x120] sm:$0xff]
      %v443 = vld [vmem:[%s405 + $0x128] sm:$0xff]
      %v444 = vld [vmem:[%s405 + $0x130] sm:$0xff]
      %v445 = vld [vmem:[%s405 + $0x138] sm:$0xff]
      %v446 = vld [vmem:[%s405 + $0x140] sm:$0xff]
      %v447 = vld [vmem:[%s405 + $0x148] sm:$0xff]
      %v448 = vld [vmem:[%s405 + $0x150] sm:$0xff]
      %v449 = vld [vmem:[%s405 + $0x158] sm:$0xff]
      %v450 = vld [vmem:[%s405 + $0x160] sm:$0xff]
      %v451 = vld [vmem:[%s405 + $0x168] sm:$0xff]
      %v452 = vld [vmem:[%s405 + $0x170] sm:$0xff]
      %v453 = vld [vmem:[%s405 + $0x178] sm:$0xff]
      %v454 = vld [vmem:[%s405 + $0x180] sm:$0xff]
      %v455 = vld [vmem:[%s405 + $0x188] sm:$0xff]
      %v456 = vld [vmem:[%s405 + $0x190] sm:$0xff]
      %v457 = vld [vmem:[%s405 + $0x198] sm:$0xff]
      %v458 = vld [vmem:[%s405 + $0x1a0] sm:$0xff]
      %v459 = vld [vmem:[%s405 + $0x1a8] sm:$0xff]
      %v460 = vld [vmem:[%s405 + $0x1b0] sm:$0xff]
      %v461 = vld [vmem:[%s405 + $0x1b8] sm:$0xff]
      %v462 = vld [vmem:[%s405 + $0x1c0] sm:$0xff]
      %v463 = vld [vmem:[%s405 + $0x1c8] sm:$0xff]
      %v464 = vld [vmem:[%s405 + $0x1d0] sm:$0xff]
      %v465 = vld [vmem:[%s405 + $0x1d8] sm:$0xff]
      %v466 = vld [vmem:[%s405 + $0x1e0] sm:$0xff]
      %v467 = vld [vmem:[%s405 + $0x1e8] sm:$0xff]
      %v468 = vld [vmem:[%s405 + $0x1f0] sm:$0xff]
      %v469 = vld [vmem:[%s405 + $0x1f8] sm:$0xff]
      %v470 = vld [vmem:[%s405 + $0x200] sm:$0xff]
      %v471 = vld [vmem:[%s405 + $0x208] sm:$0xff]
      %v472 = vld [vmem:[%s405 + $0x210] sm:$0xff]
      %v473 = vld [vmem:[%s405 + $0x218] sm:$0xff]
      %v474 = vld [vmem:[%s405 + $0x220] sm:$0xff]
      %v475 = vld [vmem:[%s405 + $0x228] sm:$0xff]
      %v476 = vld [vmem:[%s405 + $0x230] sm:$0xff]
      %v477 = vld [vmem:[%s405 + $0x238] sm:$0xff]
      %v478 = vld [vmem:[%s405 + $0x240] sm:$0xff]
      %v479 = vld [vmem:[%s405 + $0x248] sm:$0xff]
      %v480 = vld [vmem:[%s405 + $0x250] sm:$0xff]
      %v481 = vld [vmem:[%s405 + $0x258] sm:$0xff]
      %v482 = vld [vmem:[%s405 + $0x260] sm:$0xff]
      %v483 = vld [vmem:[%s405 + $0x268] sm:$0xff]
      %v484 = vld [vmem:[%s405 + $0x270] sm:$0xff]
      %v485 = vld [vmem:[%s405 + $0x278] sm:$0xff]
      %v486 = vld [vmem:[%s405 + $0x280] sm:$0xff]
      %v487 = vld [vmem:[%s405 + $0x288] sm:$0xff]
      %v488 = vld [vmem:[%s405 + $0x290] sm:$0xff]
      %v489 = vld [vmem:[%s405 + $0x298] sm:$0xff]
      %v490 = vld [vmem:[%s405 + $0x2a0] sm:$0xff]
      %v491 = vld [vmem:[%s405 + $0x2a8] sm:$0xff]
      %v492 = vld [vmem:[%s405 + $0x2b0] sm:$0xff]
      %v493 = vld [vmem:[%s405 + $0x2b8] sm:$0xff]
      %v494 = vld [vmem:[%s405 + $0x2c0] sm:$0xff]
      %v495 = vld [vmem:[%s405 + $0x2c8] sm:$0xff]
      %v496 = vld [vmem:[%s405 + $0x2d0] sm:$0xff]
      %v497 = vld [vmem:[%s405 + $0x2d8] sm:$0xff]
      %v498 = vld [vmem:[%s405 + $0x2e0] sm:$0xff]
      %v499 = vld [vmem:[%s405 + $0x2e8] sm:$0xff]
      %v500 = vld [vmem:[%s405 + $0x2f0] sm:$0xff]
      %v501 = vld [vmem:[%s405 + $0x2f8] sm:$0xff]
      %v502 = vld [vmem:[%s405 + $0x300] sm:$0xff]
      %v503 = vld [vmem:[%s405 + $0x308] sm:$0xff]
      %v504 = vld [vmem:[%s405 + $0x310] sm:$0xff]
      %v505 = vld [vmem:[%s405 + $0x318] sm:$0xff]
      %v506 = vld [vmem:[%s405 + $0x320] sm:$0xff]
      %v507 = vld [vmem:[%s405 + $0x328] sm:$0xff]
      %v508 = vld [vmem:[%s405 + $0x330] sm:$0xff]
      %v509 = vld [vmem:[%s405 + $0x338] sm:$0xff]
      %v510 = vld [vmem:[%s405 + $0x340] sm:$0xff]
      %v511 = vld [vmem:[%s405 + $0x348] sm:$0xff]
      %v512 = vld [vmem:[%s405 + $0x350] sm:$0xff]
      %v513 = vld [vmem:[%s405 + $0x358] sm:$0xff]
      %v514 = vld [vmem:[%s405 + $0x360] sm:$0xff]
      %v515 = vld [vmem:[%s405 + $0x368] sm:$0xff]
      %v516 = vld [vmem:[%s405 + $0x370] sm:$0xff]
      %v517 = vld [vmem:[%s405 + $0x378] sm:$0xff]
      %v518 = vld [vmem:[%s405 + $0x380] sm:$0xff]
      %v519 = vld [vmem:[%s405 + $0x388] sm:$0xff]
      %v520 = vld [vmem:[%s405 + $0x390] sm:$0xff]
      %v521 = vld [vmem:[%s405 + $0x398] sm:$0xff]
      %v522 = vld [vmem:[%s405 + $0x3a0] sm:$0xff]
      %v523 = vld [vmem:[%s405 + $0x3a8] sm:$0xff]
      %v524 = vld [vmem:[%s405 + $0x3b0] sm:$0xff]
      %v525 = vld [vmem:[%s405 + $0x3b8] sm:$0xff]
      %v526 = vld [vmem:[%s405 + $0x3c0] sm:$0xff]
      %v527 = vld [vmem:[%s405 + $0x3c8] sm:$0xff]
      %v528 = vld [vmem:[%s405 + $0x3d0] sm:$0xff]
      %v529 = vld [vmem:[%s405 + $0x3d8] sm:$0xff]
      %v530 = vld [vmem:[%s405 + $0x3e0] sm:$0xff]
      %v531 = vld [vmem:[%s405 + $0x3e8] sm:$0xff]
      %v532 = vld [vmem:[%s405 + $0x3f0] sm:$0xff]
      %v533 = vld [vmem:[%s405 + $0x3f8] sm:$0xff]
      %s534 = smul.u32 %s373, 16
      %s535 = smul.addr %s534, 4
      %s536 = scalar_lea.vmem [#allocation2], %s535
      %v537 = vld [vmem:[%s536] sm:$0xff]
      %v538 = vld [vmem:[%s536 + $0x8] sm:$0xff]
      %v539 = vld [vmem:[%s536 + $0x10] sm:$0xff]
      %v540 = vld [vmem:[%s536 + $0x18] sm:$0xff]
      %v541 = vld [vmem:[%s536 + $0x20] sm:$0xff]
      %v542 = vld [vmem:[%s536 + $0x28] sm:$0xff]
      %v543 = vld [vmem:[%s536 + $0x30] sm:$0xff]
      %v544 = vld [vmem:[%s536 + $0x38] sm:$0xff]
      %v553 = vunpack.c.l.b16 %v537
      %v554 = vunpack.c.h.b16 %v537
      %v555 = vunpack.c.l.b16 %v538
      %v556 = vunpack.c.h.b16 %v538
      %v557 = vunpack.c.l.b16 %v539
      %v558 = vunpack.c.h.b16 %v539
      %v559 = vunpack.c.l.b16 %v540
      %v560 = vunpack.c.h.b16 %v540
      %v561 = vunpack.c.l.b16 %v541
      %v562 = vunpack.c.h.b16 %v541
      %v563 = vunpack.c.l.b16 %v542
      %v564 = vunpack.c.h.b16 %v542
      %v565 = vunpack.c.l.b16 %v543
      %v566 = vunpack.c.h.b16 %v543
      %v567 = vunpack.c.l.b16 %v544
      %v568 = vunpack.c.h.b16 %v544
      %v569 = vpack.c.b16 %v557, %v553
      %v570 = vpack.c.b16 %v558, %v554
      %v571 = vpack.c.b16 %v559, %v555
      %v572 = vpack.c.b16 %v560, %v556
      %v573 = vpack.c.b16 %v565, %v561
      %v574 = vpack.c.b16 %v566, %v562
      %v575 = vpack.c.b16 %v567, %v563
      %v576 = vpack.c.b16 %v568, %v564
      %v713 = vunpack.c.l.b16 %v406
      %v714 = vunpack.c.h.b16 %v406
      %v715 = vunpack.c.l.b16 %v407
      %v716 = vunpack.c.h.b16 %v407
      %v717 = vunpack.c.l.b16 %v408
      %v718 = vunpack.c.h.b16 %v408
      %v719 = vunpack.c.l.b16 %v409
      %v720 = vunpack.c.h.b16 %v409
      %v721 = vunpack.c.l.b16 %v410
      %v722 = vunpack.c.h.b16 %v410
      %v723 = vunpack.c.l.b16 %v411
      %v724 = vunpack.c.h.b16 %v411
      %v725 = vunpack.c.l.b16 %v412
      %v726 = vunpack.c.h.b16 %v412
      %v727 = vunpack.c.l.b16 %v413
      %v728 = vunpack.c.h.b16 %v413
      %v729 = vunpack.c.l.b16 %v414
      %v730 = vunpack.c.h.b16 %v414
      %v731 = vunpack.c.l.b16 %v415
      %v732 = vunpack.c.h.b16 %v415
      %v733 = vunpack.c.l.b16 %v416
      %v734 = vunpack.c.h.b16 %v416
      %v735 = vunpack.c.l.b16 %v417
      %v736 = vunpack.c.h.b16 %v417
      %v737 = vunpack.c.l.b16 %v418
      %v738 = vunpack.c.h.b16 %v418
      %v739 = vunpack.c.l.b16 %v419
      %v740 = vunpack.c.h.b16 %v419
      %v741 = vunpack.c.l.b16 %v420
      %v742 = vunpack.c.h.b16 %v420
      %v743 = vunpack.c.l.b16 %v421
      %v744 = vunpack.c.h.b16 %v421
      %v745 = vunpack.c.l.b16 %v422
      %v746 = vunpack.c.h.b16 %v422
      %v747 = vunpack.c.l.b16 %v423
      %v748 = vunpack.c.h.b16 %v423
      %v749 = vunpack.c.l.b16 %v424
      %v750 = vunpack.c.h.b16 %v424
      %v751 = vunpack.c.l.b16 %v425
      %v752 = vunpack.c.h.b16 %v425
      %v753 = vunpack.c.l.b16 %v426
      %v754 = vunpack.c.h.b16 %v426
      %v755 = vunpack.c.l.b16 %v427
      %v756 = vunpack.c.h.b16 %v427
      %v757 = vunpack.c.l.b16 %v428
      %v758 = vunpack.c.h.b16 %v428
      %v759 = vunpack.c.l.b16 %v429
      %v760 = vunpack.c.h.b16 %v429
      %v761 = vunpack.c.l.b16 %v430
      %v762 = vunpack.c.h.b16 %v430
      %v763 = vunpack.c.l.b16 %v431
      %v764 = vunpack.c.h.b16 %v431
      %v765 = vunpack.c.l.b16 %v432
      %v766 = vunpack.c.h.b16 %v432
      %v767 = vunpack.c.l.b16 %v433
      %v768 = vunpack.c.h.b16 %v433
      %v769 = vunpack.c.l.b16 %v434
      %v770 = vunpack.c.h.b16 %v434
      %v771 = vunpack.c.l.b16 %v435
      %v772 = vunpack.c.h.b16 %v435
      %v773 = vunpack.c.l.b16 %v436
      %v774 = vunpack.c.h.b16 %v436
      %v775 = vunpack.c.l.b16 %v437
      %v776 = vunpack.c.h.b16 %v437
      %v777 = vunpack.c.l.b16 %v438
      %v778 = vunpack.c.h.b16 %v438
      %v779 = vunpack.c.l.b16 %v439
      %v780 = vunpack.c.h.b16 %v439
      %v781 = vunpack.c.l.b16 %v440
      %v782 = vunpack.c.h.b16 %v440
      %v783 = vunpack.c.l.b16 %v441
      %v784 = vunpack.c.h.b16 %v441
      %v785 = vunpack.c.l.b16 %v442
      %v786 = vunpack.c.h.b16 %v442
      %v787 = vunpack.c.l.b16 %v443
      %v788 = vunpack.c.h.b16 %v443
      %v789 = vunpack.c.l.b16 %v444
      %v790 = vunpack.c.h.b16 %v444
      %v791 = vunpack.c.l.b16 %v445
      %v792 = vunpack.c.h.b16 %v445
      %v793 = vunpack.c.l.b16 %v446
      %v794 = vunpack.c.h.b16 %v446
      %v795 = vunpack.c.l.b16 %v447
      %v796 = vunpack.c.h.b16 %v447
      %v797 = vunpack.c.l.b16 %v448
      %v798 = vunpack.c.h.b16 %v448
      %v799 = vunpack.c.l.b16 %v449
      %v800 = vunpack.c.h.b16 %v449
      %v801 = vunpack.c.l.b16 %v450
      %v802 = vunpack.c.h.b16 %v450
      %v803 = vunpack.c.l.b16 %v451
      %v804 = vunpack.c.h.b16 %v451
      %v805 = vunpack.c.l.b16 %v452
      %v806 = vunpack.c.h.b16 %v452
      %v807 = vunpack.c.l.b16 %v453
      %v808 = vunpack.c.h.b16 %v453
      %v809 = vunpack.c.l.b16 %v454
      %v810 = vunpack.c.h.b16 %v454
      %v811 = vunpack.c.l.b16 %v455
      %v812 = vunpack.c.h.b16 %v455
      %v813 = vunpack.c.l.b16 %v456
      %v814 = vunpack.c.h.b16 %v456
      %v815 = vunpack.c.l.b16 %v457
      %v816 = vunpack.c.h.b16 %v457
      %v817 = vunpack.c.l.b16 %v458
      %v818 = vunpack.c.h.b16 %v458
      %v819 = vunpack.c.l.b16 %v459
      %v820 = vunpack.c.h.b16 %v459
      %v821 = vunpack.c.l.b16 %v460
      %v822 = vunpack.c.h.b16 %v460
      %v823 = vunpack.c.l.b16 %v461
      %v824 = vunpack.c.h.b16 %v461
      %v825 = vunpack.c.l.b16 %v462
      %v826 = vunpack.c.h.b16 %v462
      %v827 = vunpack.c.l.b16 %v463
      %v828 = vunpack.c.h.b16 %v463
      %v829 = vunpack.c.l.b16 %v464
      %v830 = vunpack.c.h.b16 %v464
      %v831 = vunpack.c.l.b16 %v465
      %v832 = vunpack.c.h.b16 %v465
      %v833 = vunpack.c.l.b16 %v466
      %v834 = vunpack.c.h.b16 %v466
      %v835 = vunpack.c.l.b16 %v467
      %v836 = vunpack.c.h.b16 %v467
      %v837 = vunpack.c.l.b16 %v468
      %v838 = vunpack.c.h.b16 %v468
      %v839 = vunpack.c.l.b16 %v469
      %v840 = vunpack.c.h.b16 %v469
      %v841 = vunpack.c.l.b16 %v470
      %v842 = vunpack.c.h.b16 %v470
      %v843 = vunpack.c.l.b16 %v471
      %v844 = vunpack.c.h.b16 %v471
      %v845 = vunpack.c.l.b16 %v472
      %v846 = vunpack.c.h.b16 %v472
      %v847 = vunpack.c.l.b16 %v473
      %v848 = vunpack.c.h.b16 %v473
      %v849 = vunpack.c.l.b16 %v474
      %v850 = vunpack.c.h.b16 %v474
      %v851 = vunpack.c.l.b16 %v475
      %v852 = vunpack.c.h.b16 %v475
      %v853 = vunpack.c.l.b16 %v476
      %v854 = vunpack.c.h.b16 %v476
      %v855 = vunpack.c.l.b16 %v477
      %v856 = vunpack.c.h.b16 %v477
      %v857 = vunpack.c.l.b16 %v478
      %v858 = vunpack.c.h.b16 %v478
      %v859 = vunpack.c.l.b16 %v479
      %v860 = vunpack.c.h.b16 %v479
      %v861 = vunpack.c.l.b16 %v480
      %v862 = vunpack.c.h.b16 %v480
      %v863 = vunpack.c.l.b16 %v481
      %v864 = vunpack.c.h.b16 %v481
      %v865 = vunpack.c.l.b16 %v482
      %v866 = vunpack.c.h.b16 %v482
      %v867 = vunpack.c.l.b16 %v483
      %v868 = vunpack.c.h.b16 %v483
      %v869 = vunpack.c.l.b16 %v484
      %v870 = vunpack.c.h.b16 %v484
      %v871 = vunpack.c.l.b16 %v485
      %v872 = vunpack.c.h.b16 %v485
      %v873 = vunpack.c.l.b16 %v486
      %v874 = vunpack.c.h.b16 %v486
      %v875 = vunpack.c.l.b16 %v487
      %v876 = vunpack.c.h.b16 %v487
      %v877 = vunpack.c.l.b16 %v488
      %v878 = vunpack.c.h.b16 %v488
      %v879 = vunpack.c.l.b16 %v489
      %v880 = vunpack.c.h.b16 %v489
      %v881 = vunpack.c.l.b16 %v490
      %v882 = vunpack.c.h.b16 %v490
      %v883 = vunpack.c.l.b16 %v491
      %v884 = vunpack.c.h.b16 %v491
      %v885 = vunpack.c.l.b16 %v492
      %v886 = vunpack.c.h.b16 %v492
      %v887 = vunpack.c.l.b16 %v493
      %v888 = vunpack.c.h.b16 %v493
      %v889 = vunpack.c.l.b16 %v494
      %v890 = vunpack.c.h.b16 %v494
      %v891 = vunpack.c.l.b16 %v495
      %v892 = vunpack.c.h.b16 %v495
      %v893 = vunpack.c.l.b16 %v496
      %v894 = vunpack.c.h.b16 %v496
      %v895 = vunpack.c.l.b16 %v497
      %v896 = vunpack.c.h.b16 %v497
      %v897 = vunpack.c.l.b16 %v498
      %v898 = vunpack.c.h.b16 %v498
      %v899 = vunpack.c.l.b16 %v499
      %v900 = vunpack.c.h.b16 %v499
      %v901 = vunpack.c.l.b16 %v500
      %v902 = vunpack.c.h.b16 %v500
      %v903 = vunpack.c.l.b16 %v501
      %v904 = vunpack.c.h.b16 %v501
      %v905 = vunpack.c.l.b16 %v502
      %v906 = vunpack.c.h.b16 %v502
      %v907 = vunpack.c.l.b16 %v503
      %v908 = vunpack.c.h.b16 %v503
      %v909 = vunpack.c.l.b16 %v504
      %v910 = vunpack.c.h.b16 %v504
      %v911 = vunpack.c.l.b16 %v505
      %v912 = vunpack.c.h.b16 %v505
      %v913 = vunpack.c.l.b16 %v506
      %v914 = vunpack.c.h.b16 %v506
      %v915 = vunpack.c.l.b16 %v507
      %v916 = vunpack.c.h.b16 %v507
      %v917 = vunpack.c.l.b16 %v508
      %v918 = vunpack.c.h.b16 %v508
      %v919 = vunpack.c.l.b16 %v509
      %v920 = vunpack.c.h.b16 %v509
      %v921 = vunpack.c.l.b16 %v510
      %v922 = vunpack.c.h.b16 %v510
      %v923 = vunpack.c.l.b16 %v511
      %v924 = vunpack.c.h.b16 %v511
      %v925 = vunpack.c.l.b16 %v512
      %v926 = vunpack.c.h.b16 %v512
      %v927 = vunpack.c.l.b16 %v513
      %v928 = vunpack.c.h.b16 %v513
      %v929 = vunpack.c.l.b16 %v514
      %v930 = vunpack.c.h.b16 %v514
      %v931 = vunpack.c.l.b16 %v515
      %v932 = vunpack.c.h.b16 %v515
      %v933 = vunpack.c.l.b16 %v516
      %v934 = vunpack.c.h.b16 %v516
      %v935 = vunpack.c.l.b16 %v517
      %v936 = vunpack.c.h.b16 %v517
      %v937 = vunpack.c.l.b16 %v518
      %v938 = vunpack.c.h.b16 %v518
      %v939 = vunpack.c.l.b16 %v519
      %v940 = vunpack.c.h.b16 %v519
      %v941 = vunpack.c.l.b16 %v520
      %v942 = vunpack.c.h.b16 %v520
      %v943 = vunpack.c.l.b16 %v521
      %v944 = vunpack.c.h.b16 %v521
      %v945 = vunpack.c.l.b16 %v522
      %v946 = vunpack.c.h.b16 %v522
      %v947 = vunpack.c.l.b16 %v523
      %v948 = vunpack.c.h.b16 %v523
      %v949 = vunpack.c.l.b16 %v524
      %v950 = vunpack.c.h.b16 %v524
      %v951 = vunpack.c.l.b16 %v525
      %v952 = vunpack.c.h.b16 %v525
      %v953 = vunpack.c.l.b16 %v526
      %v954 = vunpack.c.h.b16 %v526
      %v955 = vunpack.c.l.b16 %v527
      %v956 = vunpack.c.h.b16 %v527
      %v957 = vunpack.c.l.b16 %v528
      %v958 = vunpack.c.h.b16 %v528
      %v959 = vunpack.c.l.b16 %v529
      %v960 = vunpack.c.h.b16 %v529
      %v961 = vunpack.c.l.b16 %v530
      %v962 = vunpack.c.h.b16 %v530
      %v963 = vunpack.c.l.b16 %v531
      %v964 = vunpack.c.h.b16 %v531
      %v965 = vunpack.c.l.b16 %v532
      %v966 = vunpack.c.h.b16 %v532
      %v967 = vunpack.c.l.b16 %v533
      %v968 = vunpack.c.h.b16 %v533
      %v969 = vpack.c.b16 %v717, %v713
      %v970 = vpack.c.b16 %v718, %v714
      %v971 = vpack.c.b16 %v719, %v715
      %v972 = vpack.c.b16 %v720, %v716
      %v973 = vpack.c.b16 %v725, %v721
      %v974 = vpack.c.b16 %v726, %v722
      %v975 = vpack.c.b16 %v727, %v723
      %v976 = vpack.c.b16 %v728, %v724
      %v977 = vpack.c.b16 %v733, %v729
      %v978 = vpack.c.b16 %v734, %v730
      %v979 = vpack.c.b16 %v735, %v731
      %v980 = vpack.c.b16 %v736, %v732
      %v981 = vpack.c.b16 %v741, %v737
      %v982 = vpack.c.b16 %v742, %v738
      %v983 = vpack.c.b16 %v743, %v739
      %v984 = vpack.c.b16 %v744, %v740
      %v985 = vpack.c.b16 %v749, %v745
      %v986 = vpack.c.b16 %v750, %v746
      %v987 = vpack.c.b16 %v751, %v747
      %v988 = vpack.c.b16 %v752, %v748
      %v989 = vpack.c.b16 %v757, %v753
      %v990 = vpack.c.b16 %v758, %v754
      %v991 = vpack.c.b16 %v759, %v755
      %v992 = vpack.c.b16 %v760, %v756
      %v993 = vpack.c.b16 %v765, %v761
      %v994 = vpack.c.b16 %v766, %v762
      %v995 = vpack.c.b16 %v767, %v763
      %v996 = vpack.c.b16 %v768, %v764
      %v997 = vpack.c.b16 %v773, %v769
      %v998 = vpack.c.b16 %v774, %v770
      %v999 = vpack.c.b16 %v775, %v771
      %v1000 = vpack.c.b16 %v776, %v772
      %v1001 = vpack.c.b16 %v781, %v777
      %v1002 = vpack.c.b16 %v782, %v778
      %v1003 = vpack.c.b16 %v783, %v779
      %v1004 = vpack.c.b16 %v784, %v780
      %v1005 = vpack.c.b16 %v789, %v785
      %v1006 = vpack.c.b16 %v790, %v786
      %v1007 = vpack.c.b16 %v791, %v787
      %v1008 = vpack.c.b16 %v792, %v788
      %v1009 = vpack.c.b16 %v797, %v793
      %v1010 = vpack.c.b16 %v798, %v794
      %v1011 = vpack.c.b16 %v799, %v795
      %v1012 = vpack.c.b16 %v800, %v796
      %v1013 = vpack.c.b16 %v805, %v801
      %v1014 = vpack.c.b16 %v806, %v802
      %v1015 = vpack.c.b16 %v807, %v803
      %v1016 = vpack.c.b16 %v808, %v804
      %v1017 = vpack.c.b16 %v813, %v809
      %v1018 = vpack.c.b16 %v814, %v810
      %v1019 = vpack.c.b16 %v815, %v811
      %v1020 = vpack.c.b16 %v816, %v812
      %v1021 = vpack.c.b16 %v821, %v817
      %v1022 = vpack.c.b16 %v822, %v818
      %v1023 = vpack.c.b16 %v823, %v819
      %v1024 = vpack.c.b16 %v824, %v820
      %v1025 = vpack.c.b16 %v829, %v825
      %v1026 = vpack.c.b16 %v830, %v826
      %v1027 = vpack.c.b16 %v831, %v827
      %v1028 = vpack.c.b16 %v832, %v828
      %v1029 = vpack.c.b16 %v837, %v833
      %v1030 = vpack.c.b16 %v838, %v834
      %v1031 = vpack.c.b16 %v839, %v835
      %v1032 = vpack.c.b16 %v840, %v836
      %v1033 = vpack.c.b16 %v845, %v841
      %v1034 = vpack.c.b16 %v846, %v842
      %v1035 = vpack.c.b16 %v847, %v843
      %v1036 = vpack.c.b16 %v848, %v844
      %v1037 = vpack.c.b16 %v853, %v849
      %v1038 = vpack.c.b16 %v854, %v850
      %v1039 = vpack.c.b16 %v855, %v851
      %v1040 = vpack.c.b16 %v856, %v852
      %v1041 = vpack.c.b16 %v861, %v857
      %v1042 = vpack.c.b16 %v862, %v858
      %v1043 = vpack.c.b16 %v863, %v859
      %v1044 = vpack.c.b16 %v864, %v860
      %v1045 = vpack.c.b16 %v869, %v865
      %v1046 = vpack.c.b16 %v870, %v866
      %v1047 = vpack.c.b16 %v871, %v867
      %v1048 = vpack.c.b16 %v872, %v868
      %v1049 = vpack.c.b16 %v877, %v873
      %v1050 = vpack.c.b16 %v878, %v874
      %v1051 = vpack.c.b16 %v879, %v875
      %v1052 = vpack.c.b16 %v880, %v876
      %v1053 = vpack.c.b16 %v885, %v881
      %v1054 = vpack.c.b16 %v886, %v882
      %v1055 = vpack.c.b16 %v887, %v883
      %v1056 = vpack.c.b16 %v888, %v884
      %v1057 = vpack.c.b16 %v893, %v889
      %v1058 = vpack.c.b16 %v894, %v890
      %v1059 = vpack.c.b16 %v895, %v891
      %v1060 = vpack.c.b16 %v896, %v892
      %v1061 = vpack.c.b16 %v901, %v897
      %v1062 = vpack.c.b16 %v902, %v898
      %v1063 = vpack.c.b16 %v903, %v899
      %v1064 = vpack.c.b16 %v904, %v900
      %v1065 = vpack.c.b16 %v909, %v905
      %v1066 = vpack.c.b16 %v910, %v906
      %v1067 = vpack.c.b16 %v911, %v907
      %v1068 = vpack.c.b16 %v912, %v908
      %v1069 = vpack.c.b16 %v917, %v913
      %v1070 = vpack.c.b16 %v918, %v914
      %v1071 = vpack.c.b16 %v919, %v915
      %v1072 = vpack.c.b16 %v920, %v916
      %v1073 = vpack.c.b16 %v925, %v921
      %v1074 = vpack.c.b16 %v926, %v922
      %v1075 = vpack.c.b16 %v927, %v923
      %v1076 = vpack.c.b16 %v928, %v924
      %v1077 = vpack.c.b16 %v933, %v929
      %v1078 = vpack.c.b16 %v934, %v930
      %v1079 = vpack.c.b16 %v935, %v931
      %v1080 = vpack.c.b16 %v936, %v932
      %v1081 = vpack.c.b16 %v941, %v937
      %v1082 = vpack.c.b16 %v942, %v938
      %v1083 = vpack.c.b16 %v943, %v939
      %v1084 = vpack.c.b16 %v944, %v940
      %v1085 = vpack.c.b16 %v949, %v945
      %v1086 = vpack.c.b16 %v950, %v946
      %v1087 = vpack.c.b16 %v951, %v947
      %v1088 = vpack.c.b16 %v952, %v948
      %v1089 = vpack.c.b16 %v957, %v953
      %v1090 = vpack.c.b16 %v958, %v954
      %v1091 = vpack.c.b16 %v959, %v955
      %v1092 = vpack.c.b16 %v960, %v956
      %v1093 = vpack.c.b16 %v965, %v961
      %v1094 = vpack.c.b16 %v966, %v962
      %v1095 = vpack.c.b16 %v967, %v963
      %v1096 = vpack.c.b16 %v968, %v964
      %1225 = vmatprep.subr.bf16.mxu0 %v998
      %1226 = vmatpush1.bf16.msra.mxu0 %v997
      %1227 = vmatprep.subr.bf16.mxu0 %v994
      %1228 = vmatpush1.bf16.msra.mxu0 %v993
      %1229 = vmatprep.subr.bf16.mxu0 %v990
      %1230 = vmatpush1.bf16.msra.mxu0 %v989
      %1231 = vmatprep.subr.bf16.mxu0 %v986
      %1232 = vmatpush1.bf16.msra.mxu0 %v985
      %1233 = vmatprep.subr.bf16.mxu0 %v982
      %1234 = vmatpush1.bf16.msra.mxu0 %v981
      %1235 = vmatprep.subr.bf16.mxu0 %v978
      %1236 = vmatpush1.bf16.msra.mxu0 %v977
      %1237 = vmatprep.subr.bf16.mxu0 %v974
      %1238 = vmatpush1.bf16.msra.mxu0 %v973
      %1239 = vmatprep.subr.bf16.mxu0 %v970
      %1240 = vmatpush1.bf16.msra.mxu0 %v969
      %1241 = vmatprep.subr.bf16.mxu0 %v1030
      %1242 = vmatpush2.bf16.msra.mxu0 %v1029
      %1243 = vmatprep.subr.bf16.mxu0 %v1026
      %1244 = vmatpush2.bf16.msra.mxu0 %v1025
      %1245 = vmatprep.subr.bf16.mxu0 %v1022
      %1246 = vmatpush2.bf16.msra.mxu0 %v1021
      %1247 = vmatprep.subr.bf16.mxu0 %v1018
      %1248 = vmatpush2.bf16.msra.mxu0 %v1017
      %1249 = vmatprep.subr.bf16.mxu0 %v1014
      %1250 = vmatpush2.bf16.msra.mxu0 %v1013
      %1251 = vmatprep.subr.bf16.mxu0 %v1010
      %1252 = vmatpush2.bf16.msra.mxu0 %v1009
      %1253 = vmatprep.subr.bf16.mxu0 %v1006
      %1254 = vmatpush2.bf16.msra.mxu0 %v1005
      %1255 = vmatprep.subr.bf16.mxu0 %v1002
      %1256 = vmatpush2.bf16.msra.mxu0 %v1001
      %1257 = vmatprep.mubr.bf16.mxu0 %v570
      %1258 = vmatmul.mubr.bf16.gmra.mxu0 %v569
      %v1259 = vpop.f32.mrf.mxu0
      %v1260 = vadd.f32 0.0, %v1259
      %v1261 = vpop.f32.mrf.mxu0
      %v1262 = vadd.f32 0.0, %v1261
      %v1263 = vpop.f32.mrf.mxu0
      %v1264 = vadd.f32 0.0, %v1263
      %v1265 = vpop.f32.mrf.mxu0
      %v1266 = vadd.f32 0.0, %v1265
      %1267 = vmatprep.mubr.bf16.mxu0 %v574
      %1268 = vmatmul.mubr.bf16.gmra.mxu0 %v573
      %v1269 = vpop.f32.mrf.mxu0
      %v1270 = vadd.f32 0.0, %v1269
      %v1271 = vpop.f32.mrf.mxu0
      %v1272 = vadd.f32 0.0, %v1271
      %v1273 = vpop.f32.mrf.mxu0
      %v1274 = vadd.f32 0.0, %v1273
      %v1275 = vpop.f32.mrf.mxu0
      %v1276 = vadd.f32 0.0, %v1275
      %1277 = vdwg.mxu0
      %1278 = vmatprep.subr.bf16.mxu0 %v1062
      %1279 = vmatpush1.bf16.msra.mxu0 %v1061
      %1280 = vmatprep.subr.bf16.mxu0 %v1058
      %1281 = vmatpush1.bf16.msra.mxu0 %v1057
      %1282 = vmatprep.subr.bf16.mxu0 %v1054
      %1283 = vmatpush1.bf16.msra.mxu0 %v1053
      %1284 = vmatprep.subr.bf16.mxu0 %v1050
      %1285 = vmatpush1.bf16.msra.mxu0 %v1049
      %1286 = vmatprep.subr.bf16.mxu0 %v1046
      %1287 = vmatpush1.bf16.msra.mxu0 %v1045
      %1288 = vmatprep.subr.bf16.mxu0 %v1042
      %1289 = vmatpush1.bf16.msra.mxu0 %v1041
      %1290 = vmatprep.subr.bf16.mxu0 %v1038
      %1291 = vmatpush1.bf16.msra.mxu0 %v1037
      %1292 = vmatprep.subr.bf16.mxu0 %v1034
      %1293 = vmatpush1.bf16.msra.mxu0 %v1033
      %1294 = vmatprep.subr.bf16.mxu0 %v1094
      %1295 = vmatpush2.bf16.msra.mxu0 %v1093
      %1296 = vmatprep.subr.bf16.mxu0 %v1090
      %1297 = vmatpush2.bf16.msra.mxu0 %v1089
      %1298 = vmatprep.subr.bf16.mxu0 %v1086
      %1299 = vmatpush2.bf16.msra.mxu0 %v1085
      %1300 = vmatprep.subr.bf16.mxu0 %v1082
      %1301 = vmatpush2.bf16.msra.mxu0 %v1081
      %1302 = vmatprep.subr.bf16.mxu0 %v1078
      %1303 = vmatpush2.bf16.msra.mxu0 %v1077
      %1304 = vmatprep.subr.bf16.mxu0 %v1074
      %1305 = vmatpush2.bf16.msra.mxu0 %v1073
      %1306 = vmatprep.subr.bf16.mxu0 %v1070
      %1307 = vmatpush2.bf16.msra.mxu0 %v1069
      %1308 = vmatprep.subr.bf16.mxu0 %v1066
      %1309 = vmatpush2.bf16.msra.mxu0 %v1065
      %1310 = vmatprep.mubr.bf16.mxu0 %v572
      %1311 = vmatmul.mubr.bf16.gmra.mxu0 %v571
      %v1312 = vpop.f32.mrf.mxu0
      %v1313 = vadd.f32 %v1260, %v1312
      %v1314 = vpop.f32.mrf.mxu0
      %v1315 = vadd.f32 %v1262, %v1314
      %v1316 = vpop.f32.mrf.mxu0
      %v1317 = vadd.f32 %v1264, %v1316
      %v1318 = vpop.f32.mrf.mxu0
      %v1319 = vadd.f32 %v1266, %v1318
      %1320 = vmatprep.mubr.bf16.mxu0 %v576
      %1321 = vmatmul.mubr.bf16.gmra.mxu0 %v575
      %v1322 = vpop.f32.mrf.mxu0
      %v1323 = vadd.f32 %v1270, %v1322
      %v1324 = vpop.f32.mrf.mxu0
      %v1325 = vadd.f32 %v1272, %v1324
      %v1326 = vpop.f32.mrf.mxu0
      %v1327 = vadd.f32 %v1274, %v1326
      %v1328 = vpop.f32.mrf.mxu0
      %v1329 = vadd.f32 %v1276, %v1328
      %1330 = vdwg.mxu0
      %1331 = vmatprep.subr.bf16.mxu0 %v1000
      %1332 = vmatpush1.bf16.msra.mxu0 %v999
      %1333 = vmatprep.subr.bf16.mxu0 %v996
      %1334 = vmatpush1.bf16.msra.mxu0 %v995
      %1335 = vmatprep.subr.bf16.mxu0 %v992
      %1336 = vmatpush1.bf16.msra.mxu0 %v991
      %1337 = vmatprep.subr.bf16.mxu0 %v988
      %1338 = vmatpush1.bf16.msra.mxu0 %v987
      %1339 = vmatprep.subr.bf16.mxu0 %v984
      %1340 = vmatpush1.bf16.msra.mxu0 %v983
      %1341 = vmatprep.subr.bf16.mxu0 %v980
      %1342 = vmatpush1.bf16.msra.mxu0 %v979
      %1343 = vmatprep.subr.bf16.mxu0 %v976
      %1344 = vmatpush1.bf16.msra.mxu0 %v975
      %1345 = vmatprep.subr.bf16.mxu0 %v972
      %1346 = vmatpush1.bf16.msra.mxu0 %v971
      %1347 = vmatprep.subr.bf16.mxu0 %v1032
      %1348 = vmatpush2.bf16.msra.mxu0 %v1031
      %1349 = vmatprep.subr.bf16.mxu0 %v1028
      %1350 = vmatpush2.bf16.msra.mxu0 %v1027
      %1351 = vmatprep.subr.bf16.mxu0 %v1024
      %1352 = vmatpush2.bf16.msra.mxu0 %v1023
      %1353 = vmatprep.subr.bf16.mxu0 %v1020
      %1354 = vmatpush2.bf16.msra.mxu0 %v1019
      %1355 = vmatprep.subr.bf16.mxu0 %v1016
      %1356 = vmatpush2.bf16.msra.mxu0 %v1015
      %1357 = vmatprep.subr.bf16.mxu0 %v1012
      %1358 = vmatpush2.bf16.msra.mxu0 %v1011
      %1359 = vmatprep.subr.bf16.mxu0 %v1008
      %1360 = vmatpush2.bf16.msra.mxu0 %v1007
      %1361 = vmatprep.subr.bf16.mxu0 %v1004
      %1362 = vmatpush2.bf16.msra.mxu0 %v1003
      %1363 = vmatprep.mubr.bf16.mxu0 %v570
      %1364 = vmatmul.mubr.bf16.gmra.mxu0 %v569
      %v1365 = vpop.f32.mrf.mxu0
      %v1366 = vadd.f32 0.0, %v1365
      %v1367 = vpop.f32.mrf.mxu0
      %v1368 = vadd.f32 0.0, %v1367
      %v1369 = vpop.f32.mrf.mxu0
      %v1370 = vadd.f32 0.0, %v1369
      %v1371 = vpop.f32.mrf.mxu0
      %v1372 = vadd.f32 0.0, %v1371
      %1373 = vmatprep.mubr.bf16.mxu0 %v574
      %1374 = vmatmul.mubr.bf16.gmra.mxu0 %v573
      %v1375 = vpop.f32.mrf.mxu0
      %v1376 = vadd.f32 0.0, %v1375
      %v1377 = vpop.f32.mrf.mxu0
      %v1378 = vadd.f32 0.0, %v1377
      %v1379 = vpop.f32.mrf.mxu0
      %v1380 = vadd.f32 0.0, %v1379
      %v1381 = vpop.f32.mrf.mxu0
      %v1382 = vadd.f32 0.0, %v1381
      %1383 = vdwg.mxu0
      %1384 = vmatprep.subr.bf16.mxu0 %v1064
      %1385 = vmatpush1.bf16.msra.mxu0 %v1063
      %1386 = vmatprep.subr.bf16.mxu0 %v1060
      %1387 = vmatpush1.bf16.msra.mxu0 %v1059
      %1388 = vmatprep.subr.bf16.mxu0 %v1056
      %1389 = vmatpush1.bf16.msra.mxu0 %v1055
      %1390 = vmatprep.subr.bf16.mxu0 %v1052
      %1391 = vmatpush1.bf16.msra.mxu0 %v1051
      %1392 = vmatprep.subr.bf16.mxu0 %v1048
      %1393 = vmatpush1.bf16.msra.mxu0 %v1047
      %1394 = vmatprep.subr.bf16.mxu0 %v1044
      %1395 = vmatpush1.bf16.msra.mxu0 %v1043
      %1396 = vmatprep.subr.bf16.mxu0 %v1040
      %1397 = vmatpush1.bf16.msra.mxu0 %v1039
      %1398 = vmatprep.subr.bf16.mxu0 %v1036
      %1399 = vmatpush1.bf16.msra.mxu0 %v1035
      %1400 = vmatprep.subr.bf16.mxu0 %v1096
      %1401 = vmatpush2.bf16.msra.mxu0 %v1095
      %1402 = vmatprep.subr.bf16.mxu0 %v1092
      %1403 = vmatpush2.bf16.msra.mxu0 %v1091
      %1404 = vmatprep.subr.bf16.mxu0 %v1088
      %1405 = vmatpush2.bf16.msra.mxu0 %v1087
      %1406 = vmatprep.subr.bf16.mxu0 %v1084
      %1407 = vmatpush2.bf16.msra.mxu0 %v1083
      %1408 = vmatprep.subr.bf16.mxu0 %v1080
      %1409 = vmatpush2.bf16.msra.mxu0 %v1079
      %1410 = vmatprep.subr.bf16.mxu0 %v1076
      %1411 = vmatpush2.bf16.msra.mxu0 %v1075
      %1412 = vmatprep.subr.bf16.mxu0 %v1072
      %1413 = vmatpush2.bf16.msra.mxu0 %v1071
      %1414 = vmatprep.subr.bf16.mxu0 %v1068
      %1415 = vmatpush2.bf16.msra.mxu0 %v1067
      %1416 = vmatprep.mubr.bf16.mxu0 %v572
      %1417 = vmatmul.mubr.bf16.gmra.mxu0 %v571
      %v1418 = vpop.f32.mrf.mxu0
      %v1419 = vadd.f32 %v1366, %v1418
      %v1420 = vpop.f32.mrf.mxu0
      %v1421 = vadd.f32 %v1368, %v1420
      %v1422 = vpop.f32.mrf.mxu0
      %v1423 = vadd.f32 %v1370, %v1422
      %v1424 = vpop.f32.mrf.mxu0
      %v1425 = vadd.f32 %v1372, %v1424
      %1426 = vmatprep.mubr.bf16.mxu0 %v576
      %1427 = vmatmul.mubr.bf16.gmra.mxu0 %v575
      %v1428 = vpop.f32.mrf.mxu0
      %v1429 = vadd.f32 %v1376, %v1428
      %v1430 = vpop.f32.mrf.mxu0
      %v1431 = vadd.f32 %v1378, %v1430
      %v1432 = vpop.f32.mrf.mxu0
      %v1433 = vadd.f32 %v1380, %v1432
      %v1434 = vpop.f32.mrf.mxu0
      %v1435 = vadd.f32 %v1382, %v1434
      %1436 = vdwg.mxu0
      %v1437 = vld [vmem:[%s343] sm:$0xf]
      %v1438 = vld [vmem:[%s343 + $0x4] sm:$0xf]
      %v1439 = vld [vmem:[%s343 + $0x8] sm:$0xf]
      %v1440 = vld [vmem:[%s343 + $0xc] sm:$0xf]
      %v1441 = vpack.c.bf16 %v1317, %v1313
      %v1442 = vpack.c.bf16 %v1319, %v1315
      %v1443 = vpack.c.bf16 %v1423, %v1419
      %v1444 = vpack.c.bf16 %v1425, %v1421
      %v1445 = vpack.c.bf16 %v1327, %v1323
      %v1446 = vpack.c.bf16 %v1329, %v1325
      %v1447 = vpack.c.bf16 %v1433, %v1429
      %v1448 = vpack.c.bf16 %v1435, %v1431
      %v1453 = vunpack.c.l.b16 %v1437
      %v1454 = vunpack.c.l.b16 %v1438
      %v1455 = vunpack.c.l.b16 %v1439
      %v1456 = vunpack.c.l.b16 %v1440
      %v1457 = vpack.c.b16 %v1454, %v1453
      %v1458 = vpack.c.b16 %v1456, %v1455
      %vm1459 = vcmask 261120
      %v1461 = vsel %vm1459, %v1457, 0
      %v1464 = vsel %vm1459, %v1458, 0
      %1466 = vmatprep.subr.bf16.mxu0 0
      %1467 = vmatpush1.bf16.msra.mxu0 0
      %1468 = vmatprep.subr.bf16.mxu0 0
      %1469 = vmatpush1.bf16.msra.mxu0 0
      %1470 = vmatprep.subr.bf16.mxu0 0
      %1471 = vmatpush1.bf16.msra.mxu0 0
      %1472 = vmatprep.subr.bf16.mxu0 0
      %1473 = vmatpush1.bf16.msra.mxu0 0
      %1474 = vmatprep.subr.bf16.mxu0 0
      %1475 = vmatpush1.bf16.msra.mxu0 0
      %1476 = vmatprep.subr.bf16.mxu0 0
      %1477 = vmatpush1.bf16.msra.mxu0 0
      %1478 = vmatprep.subr.bf16.mxu0 %v1446
      %1479 = vmatpush1.bf16.msra.mxu0 %v1445
      %1480 = vmatprep.subr.bf16.mxu0 %v1442
      %1481 = vmatpush1.bf16.msra.mxu0 %v1441
      %1482 = vmatprep.subr.bf16.mxu0 0
      %1483 = vmatpush2.bf16.msra.mxu0 0
      %1484 = vmatprep.subr.bf16.mxu0 0
      %1485 = vmatpush2.bf16.msra.mxu0 0
      %1486 = vmatprep.subr.bf16.mxu0 0
      %1487 = vmatpush2.bf16.msra.mxu0 0
      %1488 = vmatprep.subr.bf16.mxu0 0
      %1489 = vmatpush2.bf16.msra.mxu0 0
      %1490 = vmatprep.subr.bf16.mxu0 0
      %1491 = vmatpush2.bf16.msra.mxu0 0
      %1492 = vmatprep.subr.bf16.mxu0 0
      %1493 = vmatpush2.bf16.msra.mxu0 0
      %1494 = vmatprep.subr.bf16.mxu0 0
      %1495 = vmatpush2.bf16.msra.mxu0 0
      %1496 = vmatprep.subr.bf16.mxu0 0
      %1497 = vmatpush2.bf16.msra.mxu0 0
      %1498 = vmatprep.mubr.bf16.mxu0 0
      %1499 = vmatmul.mubr.bf16.gmra.mxu0 %v1461
      %v1500 = vpop.f32.mrf.mxu0
      %v1501 = vadd.f32 0.0, %v1500
      %v1502 = vpop.f32.mrf.mxu0
      %v1503 = vadd.f32 0.0, %v1502
      %v1504 = vpop.f32.mrf.mxu0
      %v1505 = vadd.f32 0.0, %v1504
      %v1506 = vpop.f32.mrf.mxu0
      %v1507 = vadd.f32 0.0, %v1506
      %1508 = vmatprep.mubr.bf16.mxu0 0
      %1509 = vmatmul.mubr.bf16.gmra.mxu0 %v1464
      %v1510 = vpop.f32.mrf.mxu0
      %v1511 = vadd.f32 0.0, %v1510
      %v1512 = vpop.f32.mrf.mxu0
      %v1513 = vadd.f32 0.0, %v1512
      %v1514 = vpop.f32.mrf.mxu0
      %v1515 = vadd.f32 0.0, %v1514
      %v1516 = vpop.f32.mrf.mxu0
      %v1517 = vadd.f32 0.0, %v1516
      %1518 = vdwg.mxu0
      %1519 = vmatprep.subr.bf16.mxu0 0
      %1520 = vmatpush1.bf16.msra.mxu0 0
      %1521 = vmatprep.subr.bf16.mxu0 0
      %1522 = vmatpush1.bf16.msra.mxu0 0
      %1523 = vmatprep.subr.bf16.mxu0 0
      %1524 = vmatpush1.bf16.msra.mxu0 0
      %1525 = vmatprep.subr.bf16.mxu0 0
      %1526 = vmatpush1.bf16.msra.mxu0 0
      %1527 = vmatprep.subr.bf16.mxu0 0
      %1528 = vmatpush1.bf16.msra.mxu0 0
      %1529 = vmatprep.subr.bf16.mxu0 0
      %1530 = vmatpush1.bf16.msra.mxu0 0
      %1531 = vmatprep.subr.bf16.mxu0 %v1448
      %1532 = vmatpush1.bf16.msra.mxu0 %v1447
      %1533 = vmatprep.subr.bf16.mxu0 %v1444
      %1534 = vmatpush1.bf16.msra.mxu0 %v1443
      %1535 = vmatprep.subr.bf16.mxu0 0
      %1536 = vmatpush2.bf16.msra.mxu0 0
      %1537 = vmatprep.subr.bf16.mxu0 0
      %1538 = vmatpush2.bf16.msra.mxu0 0
      %1539 = vmatprep.subr.bf16.mxu0 0
      %1540 = vmatpush2.bf16.msra.mxu0 0
      %1541 = vmatprep.subr.bf16.mxu0 0
      %1542 = vmatpush2.bf16.msra.mxu0 0
      %1543 = vmatprep.subr.bf16.mxu0 0
      %1544 = vmatpush2.bf16.msra.mxu0 0
      %1545 = vmatprep.subr.bf16.mxu0 0
      %1546 = vmatpush2.bf16.msra.mxu0 0
      %1547 = vmatprep.subr.bf16.mxu0 0
      %1548 = vmatpush2.bf16.msra.mxu0 0
      %1549 = vmatprep.subr.bf16.mxu0 0
      %1550 = vmatpush2.bf16.msra.mxu0 0
      %1551 = vmatprep.mubr.bf16.mxu0 0
      %1552 = vmatmul.mubr.bf16.gmra.mxu0 %v1461
      %v1553 = vpop.f32.mrf.mxu0
      %v1554 = vadd.f32 0.0, %v1553
      %v1555 = vpop.f32.mrf.mxu0
      %v1556 = vadd.f32 0.0, %v1555
      %v1557 = vpop.f32.mrf.mxu0
      %v1558 = vadd.f32 0.0, %v1557
      %v1559 = vpop.f32.mrf.mxu0
      %v1560 = vadd.f32 0.0, %v1559
      %1561 = vmatprep.mubr.bf16.mxu0 0
      %1562 = vmatmul.mubr.bf16.gmra.mxu0 %v1464
      %v1563 = vpop.f32.mrf.mxu0
      %v1564 = vadd.f32 0.0, %v1563
      %v1565 = vpop.f32.mrf.mxu0
      %v1566 = vadd.f32 0.0, %v1565
      %v1567 = vpop.f32.mrf.mxu0
      %v1568 = vadd.f32 0.0, %v1567
      %v1569 = vpop.f32.mrf.mxu0
      %v1570 = vadd.f32 0.0, %v1569
      %1571 = vdwg.mxu0
      %s1572 = scalar_select %p374, 1, 0
      %v1573 = vstv %s1572
      %vm1574 = vcmp.eq.s32.totalorder %v1573, 1
      %v1575 = vsel %vm1574, %v1313, %v1501
      %v1576 = vsel %vm1574, %v1315, %v1503
      %v1577 = vsel %vm1574, %v1419, %v1554
      %v1578 = vsel %vm1574, %v1421, %v1556
      %v1579 = vsel %vm1574, %v1317, %v1505
      %v1580 = vsel %vm1574, %v1319, %v1507
      %v1581 = vsel %vm1574, %v1423, %v1558
      %v1582 = vsel %vm1574, %v1425, %v1560
      %v1583 = vsel %vm1574, %v1323, %v1511
      %v1584 = vsel %vm1574, %v1325, %v1513
      %v1585 = vsel %vm1574, %v1429, %v1564
      %v1586 = vsel %vm1574, %v1431, %v1566
      %v1587 = vsel %vm1574, %v1327, %v1515
      %v1588 = vsel %vm1574, %v1329, %v1517
      %v1589 = vsel %vm1574, %v1433, %v1568
      %v1590 = vsel %vm1574, %v1435, %v1570
      %v1591 = vld [vmem:[%s348] sm:$0xff]
      %v1592 = vld [vmem:[%s348 + $0x8] sm:$0xff]
      %v1593 = vld [vmem:[%s348 + $0x10] sm:$0xff]
      %v1594 = vld [vmem:[%s348 + $0x18] sm:$0xff]
      %1596 = vset.pattern.permute.xlu0 0
      %1597 = vperm.xlu0 %1596, %v1591
      %v1598 = vpop.permute.xlu0 %1597
      %1601 = vset.pattern.permute.xlu0 0
      %1602 = vperm.xlu0 %1601, %v1592
      %v1603 = vpop.permute.xlu0 %1602
      %1606 = vset.pattern.permute.xlu0 0
      %1607 = vperm.xlu0 %1606, %v1593
      %v1608 = vpop.permute.xlu0 %1607
      %1611 = vset.pattern.permute.xlu0 0
      %1612 = vperm.xlu0 %1611, %v1594
      %v1613 = vpop.permute.xlu0 %1612
      %v1615 = vadd.f32 %v1575, %v1598
      %v1616 = vadd.f32 %v1576, %v1598
      %v1617 = vadd.f32 %v1577, %v1598
      %v1618 = vadd.f32 %v1578, %v1598
      %v1619 = vadd.f32 %v1579, %v1603
      %v1620 = vadd.f32 %v1580, %v1603
      %v1621 = vadd.f32 %v1581, %v1603
      %v1622 = vadd.f32 %v1582, %v1603
      %v1623 = vadd.f32 %v1583, %v1608
      %v1624 = vadd.f32 %v1584, %v1608
      %v1625 = vadd.f32 %v1585, %v1608
      %v1626 = vadd.f32 %v1586, %v1608
      %v1627 = vadd.f32 %v1587, %v1613
      %v1628 = vadd.f32 %v1588, %v1613
      %v1629 = vadd.f32 %v1589, %v1613
      %v1630 = vadd.f32 %v1590, %v1613
      %v1631 = vmax.f32 %v1615, 0.0
      %v1632 = vmax.f32 %v1616, 0.0
      %v1633 = vmax.f32 %v1617, 0.0
      %v1634 = vmax.f32 %v1618, 0.0
      %v1635 = vmax.f32 %v1619, 0.0
      %v1636 = vmax.f32 %v1620, 0.0
      %v1637 = vmax.f32 %v1621, 0.0
      %v1638 = vmax.f32 %v1622, 0.0
      %v1639 = vmax.f32 %v1623, 0.0
      %v1640 = vmax.f32 %v1624, 0.0
      %v1641 = vmax.f32 %v1625, 0.0
      %v1642 = vmax.f32 %v1626, 0.0
      %v1643 = vmax.f32 %v1627, 0.0
      %v1644 = vmax.f32 %v1628, 0.0
      %v1645 = vmax.f32 %v1629, 0.0
      %v1646 = vmax.f32 %v1630, 0.0
      %v1647 = vpack.c.bf16 %v1635, %v1631
      %v1648 = vpack.c.bf16 %v1636, %v1632
      %v1649 = vpack.c.bf16 %v1637, %v1633
      %v1650 = vpack.c.bf16 %v1638, %v1634
      %v1651 = vpack.c.bf16 %v1643, %v1639
      %v1652 = vpack.c.bf16 %v1644, %v1640
      %v1653 = vpack.c.bf16 %v1645, %v1641
      %v1654 = vpack.c.bf16 %v1646, %v1642
      %p1655 = scmp.eq.s32.totalorder %s372, 0
      // Predicated region
      $region57: #{gnn_forward.1} parent=51 // pred_check
        %p1656 = pneg %p1655
      $region58: #{gnn_forward.1} parent=51 // pred_check_branch
        %1658 = sbr.rel (%p1656) target = $region60
      $region59: #{gnn_forward.1} parent=51 // pred_region
        %v1667 = vunpack.c.l.b16 %v1647
        %v1668 = vunpack.c.l.b16 %v1648
        %v1669 = vunpack.c.l.b16 %v1649
        %v1670 = vunpack.c.l.b16 %v1650
        %v1671 = vunpack.c.h.b16 %v1647
        %v1672 = vunpack.c.h.b16 %v1648
        %v1673 = vunpack.c.h.b16 %v1649
        %v1674 = vunpack.c.h.b16 %v1650
        %v1675 = vunpack.c.l.b16 %v1651
        %v1676 = vunpack.c.l.b16 %v1652
        %v1677 = vunpack.c.l.b16 %v1653
        %v1678 = vunpack.c.l.b16 %v1654
        %v1679 = vunpack.c.h.b16 %v1651
        %v1680 = vunpack.c.h.b16 %v1652
        %v1681 = vunpack.c.h.b16 %v1653
        %v1682 = vunpack.c.h.b16 %v1654
        %v1683 = vpack.c.b16 %v1668, %v1667
        %v1684 = vpack.c.b16 %v1670, %v1669
        %v1685 = vpack.c.b16 %v1672, %v1671
        %v1686 = vpack.c.b16 %v1674, %v1673
        %v1687 = vpack.c.b16 %v1676, %v1675
        %v1688 = vpack.c.b16 %v1678, %v1677
        %v1689 = vpack.c.b16 %v1680, %v1679
        %v1690 = vpack.c.b16 %v1682, %v1681
        %s1699 = smul.addr %s402, 4
        %s1700 = scalar_lea.vmem [#allocation2], %s1699
        %1701 = vst [vmem:[%s1700] sm:$0xff] %v1683
        %1702 = vst [vmem:[%s1700 + $0x8] sm:$0xff] %v1684
        %1703 = vst [vmem:[%s1700 + $0x10] sm:$0xff] %v1685
        %1704 = vst [vmem:[%s1700 + $0x18] sm:$0xff] %v1686
        %1705 = vst [vmem:[%s1700 + $0x20] sm:$0xff] %v1687
        %1706 = vst [vmem:[%s1700 + $0x28] sm:$0xff] %v1688
        %1707 = vst [vmem:[%s1700 + $0x30] sm:$0xff] %v1689
        %1708 = vst [vmem:[%s1700 + $0x38] sm:$0xff] %v1690
      $region60: #{gnn_forward.1} parent=51 // pred_fallthru
        _
      %p1709 = scmp.eq.s32.totalorder %s372, 1
      // Predicated region
      $region61: #{gnn_forward.1} parent=51 // pred_check
        %p1710 = pneg %p1709
      $region62: #{gnn_forward.1} parent=51 // pred_check_branch
        %1712 = sbr.rel (%p1710) target = $region64
      $region63: #{gnn_forward.1} parent=51 // pred_region
        %v1721 = vunpack.c.l.b16 %v1647
        %v1722 = vunpack.c.l.b16 %v1648
        %v1723 = vunpack.c.l.b16 %v1649
        %v1724 = vunpack.c.l.b16 %v1650
        %v1725 = vunpack.c.h.b16 %v1647
        %v1726 = vunpack.c.h.b16 %v1648
        %v1727 = vunpack.c.h.b16 %v1649
        %v1728 = vunpack.c.h.b16 %v1650
        %v1729 = vunpack.c.l.b16 %v1651
        %v1730 = vunpack.c.l.b16 %v1652
        %v1731 = vunpack.c.l.b16 %v1653
        %v1732 = vunpack.c.l.b16 %v1654
        %v1733 = vunpack.c.h.b16 %v1651
        %v1734 = vunpack.c.h.b16 %v1652
        %v1735 = vunpack.c.h.b16 %v1653
        %v1736 = vunpack.c.h.b16 %v1654
        %v1737 = vpack.c.b16 %v1722, %v1721
        %v1738 = vpack.c.b16 %v1724, %v1723
        %v1739 = vpack.c.b16 %v1726, %v1725
        %v1740 = vpack.c.b16 %v1728, %v1727
        %v1741 = vpack.c.b16 %v1730, %v1729
        %v1742 = vpack.c.b16 %v1732, %v1731
        %v1743 = vpack.c.b16 %v1734, %v1733
        %v1744 = vpack.c.b16 %v1736, %v1735
        %s1753 = sadd.s32 %s402, 16
        %s1754 = smul.addr %s1753, 4
        %s1755 = scalar_lea.vmem [#allocation2], %s1754
        %1756 = vst [vmem:[%s1755] sm:$0xff] %v1737
        %1757 = vst [vmem:[%s1755 + $0x8] sm:$0xff] %v1738
        %1758 = vst [vmem:[%s1755 + $0x10] sm:$0xff] %v1739
        %1759 = vst [vmem:[%s1755 + $0x18] sm:$0xff] %v1740
        %1760 = vst [vmem:[%s1755 + $0x20] sm:$0xff] %v1741
        %1761 = vst [vmem:[%s1755 + $0x28] sm:$0xff] %v1742
        %1762 = vst [vmem:[%s1755 + $0x30] sm:$0xff] %v1743
        %1763 = vst [vmem:[%s1755 + $0x38] sm:$0xff] %v1744
      $region64: #{gnn_forward.1} parent=51 // pred_fallthru
        _
      // Predicated region
      $region65: #{gnn_forward.1} parent=51 // pred_check
        %p1764 = pneg %p360
      $region66: #{gnn_forward.1} parent=51 // pred_check_branch
        %1766 = sbr.rel (%p1764) target = $region68
      $region67: #{gnn_forward.1} parent=51 // pred_region
        %v1767 = vld [vmem:[#allocation3] sm:$0xff]
        %v1768 = vld [vmem:[#allocation3 + $0x8] sm:$0xff]
        %v1769 = vld [vmem:[#allocation3 + $0x10] sm:$0xff]
        %v1770 = vld [vmem:[#allocation3 + $0x18] sm:$0xff]
        %v1771 = vld [vmem:[%s355] sm:$0xf]
        %v1772 = vld [vmem:[%s355 + $0x4] sm:$0xf]
        %v1773 = vld [vmem:[%s355 + $0x8] sm:$0xf]
        %v1774 = vld [vmem:[%s355 + $0xc] sm:$0xf]
        %v1775 = vld [vmem:[%s355 + $0x10] sm:$0xf]
        %v1776 = vld [vmem:[%s355 + $0x14] sm:$0xf]
        %v1777 = vld [vmem:[%s355 + $0x18] sm:$0xf]
        %v1778 = vld [vmem:[%s355 + $0x1c] sm:$0xf]
        %v1779 = vld [vmem:[%s355 + $0x20] sm:$0xf]
        %v1780 = vld [vmem:[%s355 + $0x24] sm:$0xf]
        %v1781 = vld [vmem:[%s355 + $0x28] sm:$0xf]
        %v1782 = vld [vmem:[%s355 + $0x2c] sm:$0xf]
        %v1783 = vld [vmem:[%s355 + $0x30] sm:$0xf]
        %v1784 = vld [vmem:[%s355 + $0x34] sm:$0xf]
        %v1785 = vld [vmem:[%s355 + $0x38] sm:$0xf]
        %v1786 = vld [vmem:[%s355 + $0x3c] sm:$0xf]
        %v1787 = vld [vmem:[%s355 + $0x40] sm:$0xf]
        %v1788 = vld [vmem:[%s355 + $0x44] sm:$0xf]
        %v1789 = vld [vmem:[%s355 + $0x48] sm:$0xf]
        %v1790 = vld [vmem:[%s355 + $0x4c] sm:$0xf]
        %v1791 = vld [vmem:[%s355 + $0x50] sm:$0xf]
        %v1792 = vld [vmem:[%s355 + $0x54] sm:$0xf]
        %v1793 = vld [vmem:[%s355 + $0x58] sm:$0xf]
        %v1794 = vld [vmem:[%s355 + $0x5c] sm:$0xf]
        %v1795 = vld [vmem:[%s355 + $0x60] sm:$0xf]
        %v1796 = vld [vmem:[%s355 + $0x64] sm:$0xf]
        %v1797 = vld [vmem:[%s355 + $0x68] sm:$0xf]
        %v1798 = vld [vmem:[%s355 + $0x6c] sm:$0xf]
        %v1799 = vld [vmem:[%s355 + $0x70] sm:$0xf]
        %v1800 = vld [vmem:[%s355 + $0x74] sm:$0xf]
        %v1801 = vld [vmem:[%s355 + $0x78] sm:$0xf]
        %v1802 = vld [vmem:[%s355 + $0x7c] sm:$0xf]
        %v1803 = vld [vmem:[%s355 + $0x80] sm:$0xf]
        %v1804 = vld [vmem:[%s355 + $0x84] sm:$0xf]
        %v1805 = vld [vmem:[%s355 + $0x88] sm:$0xf]
        %v1806 = vld [vmem:[%s355 + $0x8c] sm:$0xf]
        %v1807 = vld [vmem:[%s355 + $0x90] sm:$0xf]
        %v1808 = vld [vmem:[%s355 + $0x94] sm:$0xf]
        %v1809 = vld [vmem:[%s355 + $0x98] sm:$0xf]
        %v1810 = vld [vmem:[%s355 + $0x9c] sm:$0xf]
        %v1811 = vld [vmem:[%s355 + $0xa0] sm:$0xf]
        %v1812 = vld [vmem:[%s355 + $0xa4] sm:$0xf]
        %v1813 = vld [vmem:[%s355 + $0xa8] sm:$0xf]
        %v1814 = vld [vmem:[%s355 + $0xac] sm:$0xf]
        %v1815 = vld [vmem:[%s355 + $0xb0] sm:$0xf]
        %v1816 = vld [vmem:[%s355 + $0xb4] sm:$0xf]
        %v1817 = vld [vmem:[%s355 + $0xb8] sm:$0xf]
        %v1818 = vld [vmem:[%s355 + $0xbc] sm:$0xf]
        %v1819 = vld [vmem:[%s355 + $0xc0] sm:$0xf]
        %v1820 = vld [vmem:[%s355 + $0xc4] sm:$0xf]
        %v1821 = vld [vmem:[%s355 + $0xc8] sm:$0xf]
        %v1822 = vld [vmem:[%s355 + $0xcc] sm:$0xf]
        %v1823 = vld [vmem:[%s355 + $0xd0] sm:$0xf]
        %v1824 = vld [vmem:[%s355 + $0xd4] sm:$0xf]
        %v1825 = vld [vmem:[%s355 + $0xd8] sm:$0xf]
        %v1826 = vld [vmem:[%s355 + $0xdc] sm:$0xf]
        %v1827 = vld [vmem:[%s355 + $0xe0] sm:$0xf]
        %v1828 = vld [vmem:[%s355 + $0xe4] sm:$0xf]
        %v1829 = vld [vmem:[%s355 + $0xe8] sm:$0xf]
        %v1830 = vld [vmem:[%s355 + $0xec] sm:$0xf]
        %v1831 = vld [vmem:[%s355 + $0xf0] sm:$0xf]
        %v1832 = vld [vmem:[%s355 + $0xf4] sm:$0xf]
        %v1833 = vld [vmem:[%s355 + $0xf8] sm:$0xf]
        %v1834 = vld [vmem:[%s355 + $0xfc] sm:$0xf]
        %v1899 = vunpack.c.l.b16 %v1771
        %v1900 = vunpack.c.l.b16 %v1772
        %v1901 = vunpack.c.l.b16 %v1773
        %v1902 = vunpack.c.l.b16 %v1774
        %v1903 = vunpack.c.l.b16 %v1775
        %v1904 = vunpack.c.l.b16 %v1776
        %v1905 = vunpack.c.l.b16 %v1777
        %v1906 = vunpack.c.l.b16 %v1778
        %v1907 = vunpack.c.l.b16 %v1779
        %v1908 = vunpack.c.l.b16 %v1780
        %v1909 = vunpack.c.l.b16 %v1781
        %v1910 = vunpack.c.l.b16 %v1782
        %v1911 = vunpack.c.l.b16 %v1783
        %v1912 = vunpack.c.l.b16 %v1784
        %v1913 = vunpack.c.l.b16 %v1785
        %v1914 = vunpack.c.l.b16 %v1786
        %v1915 = vunpack.c.l.b16 %v1787
        %v1916 = vunpack.c.l.b16 %v1788
        %v1917 = vunpack.c.l.b16 %v1789
        %v1918 = vunpack.c.l.b16 %v1790
        %v1919 = vunpack.c.l.b16 %v1791
        %v1920 = vunpack.c.l.b16 %v1792
        %v1921 = vunpack.c.l.b16 %v1793
        %v1922 = vunpack.c.l.b16 %v1794
        %v1923 = vunpack.c.l.b16 %v1795
        %v1924 = vunpack.c.l.b16 %v1796
        %v1925 = vunpack.c.l.b16 %v1797
        %v1926 = vunpack.c.l.b16 %v1798
        %v1927 = vunpack.c.l.b16 %v1799
        %v1928 = vunpack.c.l.b16 %v1800
        %v1929 = vunpack.c.l.b16 %v1801
        %v1930 = vunpack.c.l.b16 %v1802
        %v1931 = vunpack.c.l.b16 %v1803
        %v1932 = vunpack.c.l.b16 %v1804
        %v1933 = vunpack.c.l.b16 %v1805
        %v1934 = vunpack.c.l.b16 %v1806
        %v1935 = vunpack.c.l.b16 %v1807
        %v1936 = vunpack.c.l.b16 %v1808
        %v1937 = vunpack.c.l.b16 %v1809
        %v1938 = vunpack.c.l.b16 %v1810
        %v1939 = vunpack.c.l.b16 %v1811
        %v1940 = vunpack.c.l.b16 %v1812
        %v1941 = vunpack.c.l.b16 %v1813
        %v1942 = vunpack.c.l.b16 %v1814
        %v1943 = vunpack.c.l.b16 %v1815
        %v1944 = vunpack.c.l.b16 %v1816
        %v1945 = vunpack.c.l.b16 %v1817
        %v1946 = vunpack.c.l.b16 %v1818
        %v1947 = vunpack.c.l.b16 %v1819
        %v1948 = vunpack.c.l.b16 %v1820
        %v1949 = vunpack.c.l.b16 %v1821
        %v1950 = vunpack.c.l.b16 %v1822
        %v1951 = vunpack.c.l.b16 %v1823
        %v1952 = vunpack.c.l.b16 %v1824
        %v1953 = vunpack.c.l.b16 %v1825
        %v1954 = vunpack.c.l.b16 %v1826
        %v1955 = vunpack.c.l.b16 %v1827
        %v1956 = vunpack.c.l.b16 %v1828
        %v1957 = vunpack.c.l.b16 %v1829
        %v1958 = vunpack.c.l.b16 %v1830
        %v1959 = vunpack.c.l.b16 %v1831
        %v1960 = vunpack.c.l.b16 %v1832
        %v1961 = vunpack.c.l.b16 %v1833
        %v1962 = vunpack.c.l.b16 %v1834
        %v1963 = vpack.c.b16 %v1900, %v1899
        %v1964 = vpack.c.b16 %v1902, %v1901
        %v1965 = vpack.c.b16 %v1904, %v1903
        %v1966 = vpack.c.b16 %v1906, %v1905
        %v1967 = vpack.c.b16 %v1908, %v1907
        %v1968 = vpack.c.b16 %v1910, %v1909
        %v1969 = vpack.c.b16 %v1912, %v1911
        %v1970 = vpack.c.b16 %v1914, %v1913
        %v1971 = vpack.c.b16 %v1916, %v1915
        %v1972 = vpack.c.b16 %v1918, %v1917
        %v1973 = vpack.c.b16 %v1920, %v1919
        %v1974 = vpack.c.b16 %v1922, %v1921
        %v1975 = vpack.c.b16 %v1924, %v1923
        %v1976 = vpack.c.b16 %v1926, %v1925
        %v1977 = vpack.c.b16 %v1928, %v1927
        %v1978 = vpack.c.b16 %v1930, %v1929
        %v1979 = vpack.c.b16 %v1932, %v1931
        %v1980 = vpack.c.b16 %v1934, %v1933
        %v1981 = vpack.c.b16 %v1936, %v1935
        %v1982 = vpack.c.b16 %v1938, %v1937
        %v1983 = vpack.c.b16 %v1940, %v1939
        %v1984 = vpack.c.b16 %v1942, %v1941
        %v1985 = vpack.c.b16 %v1944, %v1943
        %v1986 = vpack.c.b16 %v1946, %v1945
        %v1987 = vpack.c.b16 %v1948, %v1947
        %v1988 = vpack.c.b16 %v1950, %v1949
        %v1989 = vpack.c.b16 %v1952, %v1951
        %v1990 = vpack.c.b16 %v1954, %v1953
        %v1991 = vpack.c.b16 %v1956, %v1955
        %v1992 = vpack.c.b16 %v1958, %v1957
        %v1993 = vpack.c.b16 %v1960, %v1959
        %v1994 = vpack.c.b16 %v1962, %v1961
        %2027 = vmatprep.subr.bf16.mxu0 0
        %2028 = vmatpush1.bf16.msra.mxu0 %v1970
        %2029 = vmatprep.subr.bf16.mxu0 0
        %2030 = vmatpush1.bf16.msra.mxu0 %v1969
        %2031 = vmatprep.subr.bf16.mxu0 0
        %2032 = vmatpush1.bf16.msra.mxu0 %v1968
        %2033 = vmatprep.subr.bf16.mxu0 0
        %2034 = vmatpush1.bf16.msra.mxu0 %v1967
        %2035 = vmatprep.subr.bf16.mxu0 0
        %2036 = vmatpush1.bf16.msra.mxu0 %v1966
        %2037 = vmatprep.subr.bf16.mxu0 0
        %2038 = vmatpush1.bf16.msra.mxu0 %v1965
        %2039 = vmatprep.subr.bf16.mxu0 0
        %2040 = vmatpush1.bf16.msra.mxu0 %v1964
        %2041 = vmatprep.subr.bf16.mxu0 0
        %2042 = vmatpush1.bf16.msra.mxu0 %v1963
        %2043 = vmatprep.subr.bf16.mxu0 0
        %2044 = vmatpush2.bf16.msra.mxu0 %v1978
        %2045 = vmatprep.subr.bf16.mxu0 0
        %2046 = vmatpush2.bf16.msra.mxu0 %v1977
        %2047 = vmatprep.subr.bf16.mxu0 0
        %2048 = vmatpush2.bf16.msra.mxu0 %v1976
        %2049 = vmatprep.subr.bf16.mxu0 0
        %2050 = vmatpush2.bf16.msra.mxu0 %v1975
        %2051 = vmatprep.subr.bf16.mxu0 0
        %2052 = vmatpush2.bf16.msra.mxu0 %v1974
        %2053 = vmatprep.subr.bf16.mxu0 0
        %2054 = vmatpush2.bf16.msra.mxu0 %v1973
        %2055 = vmatprep.subr.bf16.mxu0 0
        %2056 = vmatpush2.bf16.msra.mxu0 %v1972
        %2057 = vmatprep.subr.bf16.mxu0 0
        %2058 = vmatpush2.bf16.msra.mxu0 %v1971
        %2059 = vmatprep.mubr.bf16.mxu0 %v1648
        %2060 = vmatmul.mubr.bf16.gmra.mxu0 %v1647
        %v2061 = vpop.f32.mrf.mxu0
        %v2062 = vadd.f32 0.0, %v2061
        %v2063 = vpop.f32.mrf.mxu0
        %v2064 = vpop.f32.mrf.mxu0
        %v2065 = vadd.f32 0.0, %v2064
        %v2066 = vpop.f32.mrf.mxu0
        %2067 = vmatprep.mubr.bf16.mxu0 %v1652
        %2068 = vmatmul.mubr.bf16.gmra.mxu0 %v1651
        %v2069 = vpop.f32.mrf.mxu0
        %v2070 = vadd.f32 0.0, %v2069
        %v2071 = vpop.f32.mrf.mxu0
        %v2072 = vpop.f32.mrf.mxu0
        %v2073 = vadd.f32 0.0, %v2072
        %v2074 = vpop.f32.mrf.mxu0
        %2075 = vdwg.mxu0
        %2076 = vmatprep.subr.bf16.mxu0 0
        %2077 = vmatpush1.bf16.msra.mxu0 %v1986
        %2078 = vmatprep.subr.bf16.mxu0 0
        %2079 = vmatpush1.bf16.msra.mxu0 %v1985
        %2080 = vmatprep.subr.bf16.mxu0 0
        %2081 = vmatpush1.bf16.msra.mxu0 %v1984
        %2082 = vmatprep.subr.bf16.mxu0 0
        %2083 = vmatpush1.bf16.msra.mxu0 %v1983
        %2084 = vmatprep.subr.bf16.mxu0 0
        %2085 = vmatpush1.bf16.msra.mxu0 %v1982
        %2086 = vmatprep.subr.bf16.mxu0 0
        %2087 = vmatpush1.bf16.msra.mxu0 %v1981
        %2088 = vmatprep.subr.bf16.mxu0 0
        %2089 = vmatpush1.bf16.msra.mxu0 %v1980
        %2090 = vmatprep.subr.bf16.mxu0 0
        %2091 = vmatpush1.bf16.msra.mxu0 %v1979
        %2092 = vmatprep.subr.bf16.mxu0 0
        %2093 = vmatpush2.bf16.msra.mxu0 %v1994
        %2094 = vmatprep.subr.bf16.mxu0 0
        %2095 = vmatpush2.bf16.msra.mxu0 %v1993
        %2096 = vmatprep.subr.bf16.mxu0 0
        %2097 = vmatpush2.bf16.msra.mxu0 %v1992
        %2098 = vmatprep.subr.bf16.mxu0 0
        %2099 = vmatpush2.bf16.msra.mxu0 %v1991
        %2100 = vmatprep.subr.bf16.mxu0 0
        %2101 = vmatpush2.bf16.msra.mxu0 %v1990
        %2102 = vmatprep.subr.bf16.mxu0 0
        %2103 = vmatpush2.bf16.msra.mxu0 %v1989
        %2104 = vmatprep.subr.bf16.mxu0 0
        %2105 = vmatpush2.bf16.msra.mxu0 %v1988
        %2106 = vmatprep.subr.bf16.mxu0 0
        %2107 = vmatpush2.bf16.msra.mxu0 %v1987
        %2108 = vmatprep.mubr.bf16.mxu0 %v1650
        %2109 = vmatmul.mubr.bf16.gmra.mxu0 %v1649
        %v2110 = vpop.f32.mrf.mxu0
        %v2111 = vadd.f32 %v2062, %v2110
        %v2112 = vpop.f32.mrf.mxu0
        %v2113 = vpop.f32.mrf.mxu0
        %v2114 = vadd.f32 %v2065, %v2113
        %v2115 = vpop.f32.mrf.mxu0
        %2116 = vmatprep.mubr.bf16.mxu0 %v1654
        %2117 = vmatmul.mubr.bf16.gmra.mxu0 %v1653
        %v2118 = vpop.f32.mrf.mxu0
        %v2119 = vadd.f32 %v2070, %v2118
        %v2120 = vpop.f32.mrf.mxu0
        %v2121 = vpop.f32.mrf.mxu0
        %v2122 = vadd.f32 %v2073, %v2121
        %v2123 = vpop.f32.mrf.mxu0
        %2124 = vdwg.mxu0
        %v2125 = vadd.f32 %v1767, %v2111
        %v2126 = vadd.f32 %v1768, %v2114
        %v2127 = vadd.f32 %v1769, %v2119
        %v2128 = vadd.f32 %v1770, %v2122
        %2129 = vst [vmem:[#allocation3] sm:$0xff] %v2125
        %2130 = vst [vmem:[#allocation3 + $0x8] sm:$0xff] %v2126
        %2131 = vst [vmem:[#allocation3 + $0x10] sm:$0xff] %v2127
        %2132 = vst [vmem:[#allocation3 + $0x18] sm:$0xff] %v2128
      $region68: #{gnn_forward.1} parent=51 // pred_fallthru
        _
      %p2133 = pnand %p360, %p375
      %p2134 = pneg %p2133
      // Predicated region
      $region69: #{gnn_forward.1} parent=51 // pred_check
        _
      $region70: #{gnn_forward.1} parent=51 // pred_check_branch
        %2136 = sbr.rel (%p2133) target = $region72
      $region71: #{gnn_forward.1} parent=51 // pred_region
        %v2137 = vld [vmem:[%s5] sm:$0xff]
        %v2138 = vld [vmem:[%s5 + $0x8] sm:$0xff]
        %v2139 = vld [vmem:[%s5 + $0x10] sm:$0xff]
        %v2140 = vld [vmem:[%s5 + $0x18] sm:$0xff]
        %v2141 = vld [vmem:[#allocation3] sm:$0xff]
        %v2142 = vld [vmem:[#allocation3 + $0x8] sm:$0xff]
        %v2143 = vld [vmem:[#allocation3 + $0x10] sm:$0xff]
        %v2144 = vld [vmem:[#allocation3 + $0x18] sm:$0xff]
        %v2145 = vld [vmem:[%s6] sm:$0xff]
        %v2146 = vld [vmem:[%s6 + $0x8] sm:$0xff]
        %v2147 = vld [vmem:[%s6 + $0x10] sm:$0xff]
        %v2148 = vld [vmem:[%s6 + $0x18] sm:$0xff]
        %2150 = vset.pattern.permute.xlu0 0
        %2151 = vperm.xlu0 %2150, %v2145
        %v2152 = vpop.permute.xlu0 %2151
        %2155 = vset.pattern.permute.xlu0 0
        %2156 = vperm.xlu0 %2155, %v2146
        %v2157 = vpop.permute.xlu0 %2156
        %2160 = vset.pattern.permute.xlu0 0
        %2161 = vperm.xlu0 %2160, %v2147
        %v2162 = vpop.permute.xlu0 %2161
        %2165 = vset.pattern.permute.xlu0 0
        %2166 = vperm.xlu0 %2165, %v2148
        %v2167 = vpop.permute.xlu0 %2166
        %v2170 = vsel %vm1459, %v2137, 0
        %v2173 = vsel %vm1459, %v2138, 0
        %v2176 = vsel %vm1459, %v2139, 0
        %v2179 = vsel %vm1459, %v2140, 0
        %2181 = vmatprep.subr.mxu0 0.0
        %2182 = vmatpush1.msra.mxu0 0.0
        %2183 = vmatprep.subr.mxu0 0.0
        %2184 = vmatpush1.msra.mxu0 0.0
        %2185 = vmatprep.subr.mxu0 0.0
        %2186 = vmatpush1.msra.mxu0 0.0
        %2187 = vmatprep.subr.mxu0 0.0
        %2188 = vmatpush1.msra.mxu0 0.0
        %2189 = vmatprep.subr.mxu0 0.0
        %2190 = vmatpush1.msra.mxu0 0.0
        %2191 = vmatprep.subr.mxu0 0.0
        %2192 = vmatpush1.msra.mxu0 0.0
        %2193 = vmatprep.subr.mxu0 0.0
        %2194 = vmatpush1.msra.mxu0 0.0
        %2195 = vmatprep.subr.mxu0 0.0
        %2196 = vmatpush1.msra.mxu0 0.0
        %2197 = vmatprep.subr.mxu0 0.0
        %2198 = vmatpush1.msra.mxu0 0.0
        %2199 = vmatprep.subr.mxu0 0.0
        %2200 = vmatpush1.msra.mxu0 0.0
        %2201 = vmatprep.subr.mxu0 0.0
        %2202 = vmatpush1.msra.mxu0 0.0
        %2203 = vmatprep.subr.mxu0 0.0
        %2204 = vmatpush1.msra.mxu0 0.0
        %2205 = vmatprep.subr.mxu0 0.0
        %2206 = vmatpush1.msra.mxu0 %v2144
        %2207 = vmatprep.subr.mxu0 0.0
        %2208 = vmatpush1.msra.mxu0 %v2143
        %2209 = vmatprep.subr.mxu0 0.0
        %2210 = vmatpush1.msra.mxu0 %v2142
        %2211 = vmatprep.subr.mxu0 0.0
        %2212 = vmatpush1.msra.mxu0 %v2141
        %2213 = vmatprep.subr.mxu0 0.0
        %2214 = vmatpush2.msra.mxu0 0.0
        %2215 = vmatprep.subr.mxu0 0.0
        %2216 = vmatpush2.msra.mxu0 0.0
        %2217 = vmatprep.subr.mxu0 0.0
        %2218 = vmatpush2.msra.mxu0 0.0
        %2219 = vmatprep.subr.mxu0 0.0
        %2220 = vmatpush2.msra.mxu0 0.0
        %2221 = vmatprep.subr.mxu0 0.0
        %2222 = vmatpush2.msra.mxu0 0.0
        %2223 = vmatprep.subr.mxu0 0.0
        %2224 = vmatpush2.msra.mxu0 0.0
        %2225 = vmatprep.subr.mxu0 0.0
        %2226 = vmatpush2.msra.mxu0 0.0
        %2227 = vmatprep.subr.mxu0 0.0
        %2228 = vmatpush2.msra.mxu0 0.0
        %2229 = vmatprep.subr.mxu0 0.0
        %2230 = vmatpush2.msra.mxu0 0.0
        %2231 = vmatprep.subr.mxu0 0.0
        %2232 = vmatpush2.msra.mxu0 0.0
        %2233 = vmatprep.subr.mxu0 0.0
        %2234 = vmatpush2.msra.mxu0 0.0
        %2235 = vmatprep.subr.mxu0 0.0
        %2236 = vmatpush2.msra.mxu0 0.0
        %2237 = vmatprep.subr.mxu0 0.0
        %2238 = vmatpush2.msra.mxu0 0.0
        %2239 = vmatprep.subr.mxu0 0.0
        %2240 = vmatpush2.msra.mxu0 0.0
        %2241 = vmatprep.subr.mxu0 0.0
        %2242 = vmatpush2.msra.mxu0 0.0
        %2243 = vmatprep.subr.mxu0 0.0
        %2244 = vmatpush2.msra.mxu0 0.0
        %2245 = vmatprep.mubr.f32.mxu0 0.0
        %2246 = vmatmul.mubr.f32.gmra.mxu0 %v2170
        %v2247 = vpop.f32.mrf.mxu0
        %v2248 = vadd.f32 %v2152, %v2247
        %v2249 = vpop.f32.mrf.mxu0
        %2250 = vmatprep.mubr.f32.mxu0 0.0
        %2251 = vmatmul.mubr.f32.gmra.mxu0 %v2173
        %v2252 = vpop.f32.mrf.mxu0
        %v2253 = vadd.f32 %v2157, %v2252
        %v2254 = vpop.f32.mrf.mxu0
        %2255 = vmatprep.mubr.f32.mxu0 0.0
        %2256 = vmatmul.mubr.f32.gmra.mxu0 %v2176
        %v2257 = vpop.f32.mrf.mxu0
        %v2258 = vadd.f32 %v2162, %v2257
        %v2259 = vpop.f32.mrf.mxu0
        %2260 = vmatprep.mubr.f32.mxu0 0.0
        %2261 = vmatmul.mubr.f32.gmra.mxu0 %v2179
        %v2262 = vpop.f32.mrf.mxu0
        %v2263 = vadd.f32 %v2167, %v2262
        %v2264 = vpop.f32.mrf.mxu0
        %2265 = vdwg.mxu0
        %v2266 = vmax.f32 %v2248, 0.0
        %v2267 = vmax.f32 %v2253, 0.0
        %v2268 = vmax.f32 %v2258, 0.0
        %v2269 = vmax.f32 %v2263, 0.0
        %v2270 = vld [vmem:[%s7] sm:$0x1]
        %v2272 = vsel %vm1459, %v2270, 0
        %2274 = vmatprep.subr.mxu0 0.0
        %2275 = vmatpush1.msra.mxu0 0.0
        %2276 = vmatprep.subr.mxu0 0.0
        %2277 = vmatpush1.msra.mxu0 0.0
        %2278 = vmatprep.subr.mxu0 0.0
        %2279 = vmatpush1.msra.mxu0 0.0
        %2280 = vmatprep.subr.mxu0 0.0
        %2281 = vmatpush1.msra.mxu0 0.0
        %2282 = vmatprep.subr.mxu0 0.0
        %2283 = vmatpush1.msra.mxu0 0.0
        %2284 = vmatprep.subr.mxu0 0.0
        %2285 = vmatpush1.msra.mxu0 0.0
        %2286 = vmatprep.subr.mxu0 0.0
        %2287 = vmatpush1.msra.mxu0 0.0
        %2288 = vmatprep.subr.mxu0 0.0
        %2289 = vmatpush1.msra.mxu0 0.0
        %2290 = vmatprep.subr.mxu0 0.0
        %2291 = vmatpush1.msra.mxu0 0.0
        %2292 = vmatprep.subr.mxu0 0.0
        %2293 = vmatpush1.msra.mxu0 0.0
        %2294 = vmatprep.subr.mxu0 0.0
        %2295 = vmatpush1.msra.mxu0 0.0
        %2296 = vmatprep.subr.mxu0 0.0
        %2297 = vmatpush1.msra.mxu0 0.0
        %2298 = vmatprep.subr.mxu0 0.0
        %2299 = vmatpush1.msra.mxu0 %v2269
        %2300 = vmatprep.subr.mxu0 0.0
        %2301 = vmatpush1.msra.mxu0 %v2268
        %2302 = vmatprep.subr.mxu0 0.0
        %2303 = vmatpush1.msra.mxu0 %v2267
        %2304 = vmatprep.subr.mxu0 0.0
        %2305 = vmatpush1.msra.mxu0 %v2266
        %2306 = vmatprep.subr.mxu0 0.0
        %2307 = vmatpush2.msra.mxu0 0.0
        %2308 = vmatprep.subr.mxu0 0.0
        %2309 = vmatpush2.msra.mxu0 0.0
        %2310 = vmatprep.subr.mxu0 0.0
        %2311 = vmatpush2.msra.mxu0 0.0
        %2312 = vmatprep.subr.mxu0 0.0
        %2313 = vmatpush2.msra.mxu0 0.0
        %2314 = vmatprep.subr.mxu0 0.0
        %2315 = vmatpush2.msra.mxu0 0.0
        %2316 = vmatprep.subr.mxu0 0.0
        %2317 = vmatpush2.msra.mxu0 0.0
        %2318 = vmatprep.subr.mxu0 0.0
        %2319 = vmatpush2.msra.mxu0 0.0
        %2320 = vmatprep.subr.mxu0 0.0
        %2321 = vmatpush2.msra.mxu0 0.0
        %2322 = vmatprep.subr.mxu0 0.0
        %2323 = vmatpush2.msra.mxu0 0.0
        %2324 = vmatprep.subr.mxu0 0.0
        %2325 = vmatpush2.msra.mxu0 0.0
        %2326 = vmatprep.subr.mxu0 0.0
        %2327 = vmatpush2.msra.mxu0 0.0
        %2328 = vmatprep.subr.mxu0 0.0
        %2329 = vmatpush2.msra.mxu0 0.0
        %2330 = vmatprep.subr.mxu0 0.0
        %2331 = vmatpush2.msra.mxu0 0.0
        %2332 = vmatprep.subr.mxu0 0.0
        %2333 = vmatpush2.msra.mxu0 0.0
        %2334 = vmatprep.subr.mxu0 0.0
        %2335 = vmatpush2.msra.mxu0 0.0
        %2336 = vmatprep.subr.mxu0 0.0
        %2337 = vmatpush2.msra.mxu0 0.0
        %2338 = vmatprep.mubr.f32.mxu0 0.0
        %2339 = vmatmul.mubr.f32.gmra.mxu0 %v2272
        %v2340 = vpop.f32.mrf.mxu0
        %v2341 = vadd.f32 0.0, %v2340
        %v2342 = vpop.f32.mrf.mxu0
        %2343 = vdwg.mxu0
        %2344 = vst [vmem:[%s8] sm:$0x1] %v2341
      $region72: #{gnn_forward.1} parent=51 // pred_fallthru
        _
      // Predicated region
      $region73: #{gnn_forward.1} parent=51 // pred_check
        %p2345 = pneg %p231
      $region74: #{gnn_forward.1} parent=51 // pred_check_branch
        %2347 = sbr.rel (%p2345) target = $region76
      $region75: #{gnn_forward.1} parent=51 // pred_region
        _
      $region76: #{gnn_forward.1} parent=51 // pred_fallthru
        _
      // Predicated region
      $region77: #{gnn_forward.1} parent=51 // pred_check
        %p2348 = pneg %p231
      $region78: #{gnn_forward.1} parent=51 // pred_check_branch
        %2350 = sbr.rel (%p2348) target = $region80
      $region79: #{gnn_forward.1} parent=51 // pred_region
        _
      $region80: #{gnn_forward.1} parent=51 // pred_fallthru
        _
    $region52: #{gnn_forward.1} parent=5 // pred_fallthru
      _
    %p2351 = scmp.le.s32.totalorder 2, %s14
    // Predicated region
    $region81: #{gnn_forward.1} parent=5 // pred_check
      %p2352 = pneg %p2351
    $region82: #{gnn_forward.1} parent=5 // pred_check_branch
      %2354 = sbr.rel (%p2352) target = $region84
    $region83: #{gnn_forward.1} parent=5 // pred_region
      %s2355 = ssub.s32 %s14, 2
    $region84: #{gnn_forward.1} parent=5 // pred_fallthru
      _
  $region6: #{gnn_forward.1} parent=0 // loop_footer
    %s18 = sadd.s32 1, %s14
  $region7: #{gnn_forward.1} parent=0 // loop_footer_branch
    %13 = sbr.rel target = $region3
  $region8: #{gnn_forward.1} parent=0 // loop_exit
    _

</llo_original>
